<compile_context>
chip_gen: v7x
topology: tpu7x:2x2x1
jax: 0.10.0
libtpu: 0.0.40
codegen_flags: <defaults>
</compile_context>

<pallas_src>
import jax
import jax.numpy as jnp
from jax.experimental import pallas as pl
from jax.experimental.pallas import tpu as pltpu

LN_EPS = 1e-5  # nn.LayerNorm default


def _gate_kernel(x1_ref, x2_ref, top_ref, bot_ref, p_ref, out_ref, pad_ref):
    # Block shapes:
    #   x1_ref / x2_ref / out_ref : (1, TH, W, D)   x1 half / x2 half / output
    #   top_ref / bot_ref         : (1, 1, W, D)    x2 halo rows (clamped at border)
    #   p_ref                     : (12, D)         packed params (f32)
    #   pad_ref (scratch)         : (TH+2, W+2, D)  zero-bordered LayerNorm(x2) tile
    r = pl.program_id(1)
    n_row = pl.num_programs(1)
    _, TH, W, D = x2_ref.shape
    cdt = pad_ref.dtype

    p = p_ref[...]                        # (12, D) f32
    gamma = p[10:11, :]                   # (1, D)
    beta = p[11:12, :]
    conv_b = p[9:10, :].astype(cdt)       # (1, D)
    w_taps = p[0:9, :].astype(cdt)        # (9, D)

    def layernorm(v):                     # LN over channels, f32 statistics
        v32 = v.astype(jnp.float32)
        mu = jnp.mean(v32, axis=-1, keepdims=True)
        var = jnp.mean((v32 - mu) * (v32 - mu), axis=-1, keepdims=True)
        return ((v32 - mu) * jax.lax.rsqrt(var + LN_EPS) * gamma + beta).astype(cdt)

    def pad_w(v):                         # zero column on each side of the W axis
        z = jnp.zeros((v.shape[0], 1, D), cdt)
        return jnp.concatenate([z, v, z], axis=1)

    # Interior rows: LayerNorm(x2 tile), W-padded, stored once (row-offset only,
    # so the store stays sublane-aligned).
    pad_ref[1:TH + 1, :, :] = pad_w(layernorm(x2_ref[0]))

    # Halo rows: neighbouring image rows, or the conv's zero padding at the
    # top / bottom image border.
    top_n = layernorm(top_ref[0])         # (1, W, D)
    top_n = jnp.where(r > 0, top_n, jnp.zeros_like(top_n))
    pad_ref[0:1, :, :] = pad_w(top_n)

    bot_n = layernorm(bot_ref[0])         # (1, W, D)
    bot_n = jnp.where(r < n_row - 1, bot_n, jnp.zeros_like(bot_n))
    pad_ref[TH + 1:TH + 2, :, :] = pad_w(bot_n)

    # Depthwise 3x3 cross-correlation (padding=1): 9 VPU FMAs over static slices
    # of the padded scratch; the accumulator starts at the conv bias.
    acc = pad_ref[0:TH, 0:W, :] * w_taps[0:1, :] + conv_b
    for i in range(1, 9):
        kh, kw = divmod(i, 3)
        acc = acc + pad_ref[kh:kh + TH, kw:kw + W, :] * w_taps[i:i + 1, :]

    # Gating multiply in the I/O dtype; x1 is touched only here (no early upcast).
    out_ref[0] = x1_ref[0] * acc.astype(out_ref.dtype)


def pack_params(params):
    """Pack the depthwise taps / conv bias / LN gamma / LN beta into (12, dim).

    Rows 0..8: taps, row index = kh*3 + kw, value = conv_w[:, kh, kw].
    Row 9: conv bias.  Row 10: LN gamma.  Row 11: LN beta.
    """
    dim = params["gamma"].shape[0]
    taps = jnp.transpose(params["conv_w"], (1, 2, 0)).reshape(9, dim)
    return jnp.concatenate(
        [taps,
         params["conv_b"][None, :],
         params["gamma"][None, :],
         params["beta"][None, :]], axis=0).astype(jnp.float32)


def _step_vmem_bytes(th, W, dim, io_itemsize, cdt_itemsize):
    io_blk = th * W * dim * io_itemsize          # x1 / x2 / out tile (each)
    halo = 2 * W * dim * io_itemsize             # the two halo rows
    pipeline = 2 * (3 * io_blk + halo)           # double-buffered pipeline copies
    scratch = (th + 2) * (W + 2) * dim * cdt_itemsize
    temps = 3 * th * W * dim * 4                 # rough bound on traced temporaries
    return pipeline + scratch + temps


def _pick_row_tile(H, W, dim, io_itemsize, cdt_itemsize, budget_bytes):
    """Largest divisor of H whose per-grid-step VMEM footprint fits the budget."""
    for th in range(H, 0, -1):
        if H % th == 0 and _step_vmem_bytes(th, W, dim, io_itemsize,
                                            cdt_itemsize) <= budget_bytes:
            return th
    return 1


def gate_forward(x, params, H, W, *, tile_h=None, vmem_budget_bytes=8 * 1024 * 1024):
    """x: (B, N, C) with N = H*W, C = 2*dim. Returns (B, N, dim)."""
    B, N, C = x.shape
    assert N == H * W, "N must equal H*W"
    assert C % 2 == 0
    dim = C // 2
    # TODO(synk): pad channels when dim % 128 != 0 (sub-128 lanes would force
    # masked partial stores and de-densify every VPU op).
    assert dim % 128 == 0, "dim must be a multiple of 128 for lane-dense blocks"

    # LN statistics are always f32; tap/gating math follows the model dtype
    # (bf16 VALUs on v6e/v7x; f32 inputs keep a pure f32 path, v5e-safe).
    cdt = jnp.float32 if x.dtype == jnp.dtype(jnp.float32) else jnp.bfloat16
    io_itemsize = jnp.dtype(x.dtype).itemsize
    cdt_itemsize = jnp.dtype(cdt).itemsize

    x_img = x.reshape(B, H, W, C)        # free reshape; NO channel chunking here
    packed = pack_params(params)

    if tile_h is None:
        TH = _pick_row_tile(H, W, dim, io_itemsize, cdt_itemsize, vmem_budget_bytes)
    else:
        assert H % tile_h == 0, "tile_h must divide H"
        TH = tile_h
    n_row = H // TH

    est = _step_vmem_bytes(TH, W, dim, io_itemsize, cdt_itemsize)
    # Scoped-VMEM limit: at least the v6e/v7x default, generous headroom over the
    # estimate, but well below v7x's 64 MiB physical VMEM.
    vmem_limit = int(min(max(2 * est, 32 * 1024 * 1024), 48 * 1024 * 1024))

    x1_spec = pl.BlockSpec((1, TH, W, dim), lambda b, r: (b, r, 0, 0))
    x2_spec = pl.BlockSpec((1, TH, W, dim), lambda b, r: (b, r, 0, 1))
    top_spec = pl.BlockSpec((1, 1, W, dim),
                            lambda b, r: (b, jnp.maximum(r * TH - 1, 0), 0, 1))
    bot_spec = pl.BlockSpec((1, 1, W, dim),
                            lambda b, r: (b, jnp.minimum((r + 1) * TH, H - 1), 0, 1))
    prm_spec = pl.BlockSpec((12, dim), lambda b, r: (0, 0))   # constant -> fetched once
    out_spec = pl.BlockSpec((1, TH, W, dim), lambda b, r: (b, r, 0, 0))

    out = pl.pallas_call(
        _gate_kernel,
        out_shape=jax.ShapeDtypeStruct((B, H, W, dim), x.dtype),
        grid_spec=pltpu.PrefetchScalarGridSpec(
            num_scalar_prefetch=0,
            grid=(B, n_row),
            in_specs=[x1_spec, x2_spec, top_spec, bot_spec, prm_spec],
            out_specs=out_spec,
            scratch_shapes=[pltpu.VMEM((TH + 2, W + 2, dim), cdt)],
        ),
        compiler_params=pltpu.CompilerParams(
            dimension_semantics=("parallel", "parallel"),
            vmem_limit_bytes=vmem_limit),
    )(x_img, x_img, x_img, x_img, packed)
    return out.reshape(B, N, dim)


def reference(x, params, H, W):
    """Pure-JAX reference matching the PyTorch Gate forward."""
    B, N, C = x.shape
    dim = C // 2
    x1 = x[..., :dim]
    x2 = x[..., dim:]
    mu = jnp.mean(x2, axis=-1, keepdims=True)
    var = jnp.mean((x2 - mu) ** 2, axis=-1, keepdims=True)
    xn = (x2 - mu) / jnp.sqrt(var + LN_EPS) * params["gamma"] + params["beta"]
    xn = xn.reshape(B, H, W, dim)
    w_hwio = jnp.transpose(params["conv_w"], (1, 2, 0))[:, :, None, :]  # (3,3,1,dim)
    y = jax.lax.conv_general_dilated(
        xn, w_hwio, window_strides=(1, 1), padding=((1, 1), (1, 1)),
        dimension_numbers=("NHWC", "HWIO", "NHWC"), feature_group_count=dim)
    y = y + params["conv_b"]
    return x1 * y.reshape(B, N, dim)


if __name__ == "__main__":
    key = jax.random.PRNGKey(0)
    kx, kcw, kcb, kg, kbt = jax.random.split(key, 5)

    # Small shapes consistent with the module: x is (B, N, C), N = H*W, C = 2*dim.
    B, H, W, dim = 2, 16, 16, 128          # dim on the lane axis (fully lane-dense)
    N, C = H * W, 2 * dim

    x = jax.random.normal(kx, (B, N, C), jnp.float32)
    params = dict(
        gamma=1.0 + 0.1 * jax.random.normal(kg, (dim,), jnp.float32),
        beta=0.1 * jax.random.normal(kbt, (dim,), jnp.float32),
        conv_w=0.2 * jax.random.normal(kcw, (dim, 3, 3), jnp.float32),
        conv_b=0.1 * jax.random.normal(kcb, (dim,), jnp.float32),
    )

    ref = reference(x, params, H, W)

    # Exercise both the multi-row-tile halo path (tile_h=8 -> grid (B, 2)) and
    # the auto-picked tiling.
    for th in (8, None):
        out = jax.block_until_ready(gate_forward(x, params, H, W, tile_h=th))
        assert out.shape == (B, N, dim)
        max_err = float(jnp.max(jnp.abs(out - ref)))
        assert jnp.allclose(out, ref, atol=1e-4, rtol=1e-4), \
            f"mismatch (tile_h={th}), max_err={max_err}"

    print("KERNEL_OK")
</pallas_src>

<mosaic_0001>
module attributes {stable_mosaic.version = 11 : i64} {
  func.func @_gate_kernel(%arg0: i32, %arg1: i32, %arg2: memref<1x8x16x128xf32, #tpu.memory_space<vmem>>, %arg3: memref<1x8x16x128xf32, #tpu.memory_space<vmem>>, %arg4: memref<1x1x16x128xf32, #tpu.memory_space<vmem>>, %arg5: memref<1x1x16x128xf32, #tpu.memory_space<vmem>>, %arg6: memref<12x128xf32, #tpu.memory_space<vmem>>, %arg7: memref<1x8x16x128xf32, #tpu.memory_space<vmem>>, %arg8: memref<10x18x128xf32, #tpu.memory_space<vmem>>) attributes {dimension_semantics = [#tpu.dimension_semantics<parallel>, #tpu.dimension_semantics<parallel>], iteration_bounds = array<i64: 2, 2>, scalar_prefetch = 0 : i64, scratch_operands = 1 : i64, tpu.core_type = #tpu.core_type<tc>, window_params = [{transform_indices = @transform_0, window_bounds = array<i64: 1, 8, 16, 128>}, {transform_indices = @transform_1, window_bounds = array<i64: 1, 8, 16, 128>}, {transform_indices = @transform_2, window_bounds = array<i64: 1, 1, 16, 128>}, {transform_indices = @transform_3, window_bounds = array<i64: 1, 1, 16, 128>}, {pipeline_mode = #tpu.pipeline_mode<synchronous>, transform_indices = @transform_4, window_bounds = array<i64: 12, 128>}, {transform_indices = @transform_5, window_bounds = array<i64: 1, 8, 16, 128>}]} {
    %c0 = arith.constant 0 : index
    %c0_0 = arith.constant 0 : index
    %0 = vector.load %arg6[%c0, %c0_0] : memref<12x128xf32, #tpu.memory_space<vmem>>, vector<12x128xf32>
    %1 = vector.extract_strided_slice %0 {offsets = [10, 0], sizes = [1, 128], strides = [1, 1]} : vector<12x128xf32> to vector<1x128xf32>
    %2 = vector.extract_strided_slice %0 {offsets = [11, 0], sizes = [1, 128], strides = [1, 1]} : vector<12x128xf32> to vector<1x128xf32>
    %3 = vector.extract_strided_slice %0 {offsets = [9, 0], sizes = [1, 128], strides = [1, 1]} : vector<12x128xf32> to vector<1x128xf32>
    %4 = vector.extract_strided_slice %0 {offsets = [0, 0], sizes = [9, 128], strides = [1, 1]} : vector<12x128xf32> to vector<9x128xf32>
    %c0_1 = arith.constant 0 : index
    %c0_2 = arith.constant 0 : index
    %c0_3 = arith.constant 0 : index
    %c0_4 = arith.constant 0 : index
    %5 = vector.load %arg3[%c0_1, %c0_2, %c0_3, %c0_4] : memref<1x8x16x128xf32, #tpu.memory_space<vmem>>, vector<1x8x16x128xf32>
    %6 = vector.shape_cast %5 : vector<1x8x16x128xf32> to vector<8x16x128xf32>
    %cst = arith.constant dense<0.000000e+00> : vector<8x16xf32>
    %7 = vector.multi_reduction <add>, %6, %cst [2] : vector<8x16x128xf32> to vector<8x16xf32>
    %8 = vector.shape_cast %7 : vector<8x16xf32> to vector<8x16x1xf32>
    %cst_5 = arith.constant 1.280000e+02 : f32
    %9 = vector.broadcast %cst_5 : f32 to vector<8x16x1xf32>
    %10 = arith.divf %8, %9 : vector<8x16x1xf32>
    %11 = vector.broadcast %10 : vector<8x16x1xf32> to vector<8x16x128xf32>
    %12 = arith.subf %6, %11 : vector<8x16x128xf32>
    %13 = vector.broadcast %10 : vector<8x16x1xf32> to vector<8x16x128xf32>
    %14 = arith.subf %6, %13 : vector<8x16x128xf32>
    %15 = arith.mulf %12, %14 : vector<8x16x128xf32>
    %cst_6 = arith.constant dense<0.000000e+00> : vector<8x16xf32>
    %16 = vector.multi_reduction <add>, %15, %cst_6 [2] : vector<8x16x128xf32> to vector<8x16xf32>
    %17 = vector.shape_cast %16 : vector<8x16xf32> to vector<8x16x1xf32>
    %cst_7 = arith.constant 1.280000e+02 : f32
    %18 = vector.broadcast %cst_7 : f32 to vector<8x16x1xf32>
    %19 = arith.divf %17, %18 : vector<8x16x1xf32>
    %20 = vector.broadcast %10 : vector<8x16x1xf32> to vector<8x16x128xf32>
    %21 = arith.subf %6, %20 : vector<8x16x128xf32>
    %cst_8 = arith.constant 9.99999974E-6 : f32
    %22 = vector.broadcast %cst_8 : f32 to vector<8x16x1xf32>
    %23 = arith.addf %19, %22 : vector<8x16x1xf32>
    %24 = math.rsqrt %23 : vector<8x16x1xf32>
    %25 = vector.broadcast %24 : vector<8x16x1xf32> to vector<8x16x128xf32>
    %26 = arith.mulf %21, %25 : vector<8x16x128xf32>
    %27 = vector.shape_cast %1 : vector<1x128xf32> to vector<1x1x128xf32>
    %28 = vector.broadcast %27 : vector<1x1x128xf32> to vector<8x16x128xf32>
    %29 = arith.mulf %26, %28 : vector<8x16x128xf32>
    %30 = vector.shape_cast %2 : vector<1x128xf32> to vector<1x1x128xf32>
    %31 = vector.broadcast %30 : vector<1x1x128xf32> to vector<8x16x128xf32>
    %32 = arith.addf %29, %31 : vector<8x16x128xf32>
    %cst_9 = arith.constant 0.000000e+00 : f32
    %33 = vector.broadcast %cst_9 : f32 to vector<8x1x128xf32>
    %34 = tpu.concatenate %33, %32, %33 in 1 : vector<8x1x128xf32>, vector<8x16x128xf32>, vector<8x1x128xf32> -> vector<8x18x128xf32>
    %c1 = arith.constant 1 : index
    %c0_10 = arith.constant 0 : index
    %c0_11 = arith.constant 0 : index
    %35 = vector.load %arg8[%c1, %c0_10, %c0_11] : memref<10x18x128xf32, #tpu.memory_space<vmem>>, vector<8x18x128xf32>
    tpu.vector_store %arg8[%c1, %c0_10, %c0_11], %34 {strides = array<i32>} : memref<10x18x128xf32, #tpu.memory_space<vmem>>, vector<8x18x128xf32>,
    %c0_12 = arith.constant 0 : index
    %c0_13 = arith.constant 0 : index
    %c0_14 = arith.constant 0 : index
    %c0_15 = arith.constant 0 : index
    %36 = vector.load %arg4[%c0_12, %c0_13, %c0_14, %c0_15] : memref<1x1x16x128xf32, #tpu.memory_space<vmem>>, vector<1x1x16x128xf32>
    %37 = vector.shape_cast %36 : vector<1x1x16x128xf32> to vector<1x16x128xf32>
    %cst_16 = arith.constant dense<0.000000e+00> : vector<1x16xf32>
    %38 = vector.multi_reduction <add>, %37, %cst_16 [2] : vector<1x16x128xf32> to vector<1x16xf32>
    %39 = vector.shape_cast %38 : vector<1x16xf32> to vector<1x16x1xf32>
    %cst_17 = arith.constant 1.280000e+02 : f32
    %40 = vector.broadcast %cst_17 : f32 to vector<1x16x1xf32>
    %41 = arith.divf %39, %40 : vector<1x16x1xf32>
    %42 = vector.broadcast %41 : vector<1x16x1xf32> to vector<1x16x128xf32>
    %43 = arith.subf %37, %42 : vector<1x16x128xf32>
    %44 = vector.broadcast %41 : vector<1x16x1xf32> to vector<1x16x128xf32>
    %45 = arith.subf %37, %44 : vector<1x16x128xf32>
    %46 = arith.mulf %43, %45 : vector<1x16x128xf32>
    %cst_18 = arith.constant dense<0.000000e+00> : vector<1x16xf32>
    %47 = vector.multi_reduction <add>, %46, %cst_18 [2] : vector<1x16x128xf32> to vector<1x16xf32>
    %48 = vector.shape_cast %47 : vector<1x16xf32> to vector<1x16x1xf32>
    %cst_19 = arith.constant 1.280000e+02 : f32
    %49 = vector.broadcast %cst_19 : f32 to vector<1x16x1xf32>
    %50 = arith.divf %48, %49 : vector<1x16x1xf32>
    %51 = vector.broadcast %41 : vector<1x16x1xf32> to vector<1x16x128xf32>
    %52 = arith.subf %37, %51 : vector<1x16x128xf32>
    %cst_20 = arith.constant 9.99999974E-6 : f32
    %53 = vector.broadcast %cst_20 : f32 to vector<1x16x1xf32>
    %54 = arith.addf %50, %53 : vector<1x16x1xf32>
    %55 = math.rsqrt %54 : vector<1x16x1xf32>
    %56 = vector.broadcast %55 : vector<1x16x1xf32> to vector<1x16x128xf32>
    %57 = arith.mulf %52, %56 : vector<1x16x128xf32>
    %58 = vector.shape_cast %1 : vector<1x128xf32> to vector<1x1x128xf32>
    %59 = vector.broadcast %58 : vector<1x1x128xf32> to vector<1x16x128xf32>
    %60 = arith.mulf %57, %59 : vector<1x16x128xf32>
    %61 = vector.shape_cast %2 : vector<1x128xf32> to vector<1x1x128xf32>
    %62 = vector.broadcast %61 : vector<1x1x128xf32> to vector<1x16x128xf32>
    %63 = arith.addf %60, %62 : vector<1x16x128xf32>
    %c0_i32 = arith.constant 0 : i32
    %64 = arith.cmpi sgt, %arg1, %c0_i32 : i32
    %cst_21 = arith.constant 0.000000e+00 : f32
    %65 = vector.broadcast %cst_21 : f32 to vector<1x16x128xf32>
    %66 = arith.select %64, %63, %65 : vector<1x16x128xf32>
    %cst_22 = arith.constant 0.000000e+00 : f32
    %67 = vector.broadcast %cst_22 : f32 to vector<1x1x128xf32>
    %68 = tpu.concatenate %67, %66, %67 in 1 : vector<1x1x128xf32>, vector<1x16x128xf32>, vector<1x1x128xf32> -> vector<1x18x128xf32>
    %c0_23 = arith.constant 0 : index
    %c0_24 = arith.constant 0 : index
    %c0_25 = arith.constant 0 : index
    %69 = vector.load %arg8[%c0_23, %c0_24, %c0_25] : memref<10x18x128xf32, #tpu.memory_space<vmem>>, vector<1x18x128xf32>
    tpu.vector_store %arg8[%c0_23, %c0_24, %c0_25], %68 {strides = array<i32>} : memref<10x18x128xf32, #tpu.memory_space<vmem>>, vector<1x18x128xf32>,
    %c0_26 = arith.constant 0 : index
    %c0_27 = arith.constant 0 : index
    %c0_28 = arith.constant 0 : index
    %c0_29 = arith.constant 0 : index
    %70 = vector.load %arg5[%c0_26, %c0_27, %c0_28, %c0_29] : memref<1x1x16x128xf32, #tpu.memory_space<vmem>>, vector<1x1x16x128xf32>
    %71 = vector.shape_cast %70 : vector<1x1x16x128xf32> to vector<1x16x128xf32>
    %cst_30 = arith.constant dense<0.000000e+00> : vector<1x16xf32>
    %72 = vector.multi_reduction <add>, %71, %cst_30 [2] : vector<1x16x128xf32> to vector<1x16xf32>
    %73 = vector.shape_cast %72 : vector<1x16xf32> to vector<1x16x1xf32>
    %cst_31 = arith.constant 1.280000e+02 : f32
    %74 = vector.broadcast %cst_31 : f32 to vector<1x16x1xf32>
    %75 = arith.divf %73, %74 : vector<1x16x1xf32>
    %76 = vector.broadcast %75 : vector<1x16x1xf32> to vector<1x16x128xf32>
    %77 = arith.subf %71, %76 : vector<1x16x128xf32>
    %78 = vector.broadcast %75 : vector<1x16x1xf32> to vector<1x16x128xf32>
    %79 = arith.subf %71, %78 : vector<1x16x128xf32>
    %80 = arith.mulf %77, %79 : vector<1x16x128xf32>
    %cst_32 = arith.constant dense<0.000000e+00> : vector<1x16xf32>
    %81 = vector.multi_reduction <add>, %80, %cst_32 [2] : vector<1x16x128xf32> to vector<1x16xf32>
    %82 = vector.shape_cast %81 : vector<1x16xf32> to vector<1x16x1xf32>
    %cst_33 = arith.constant 1.280000e+02 : f32
    %83 = vector.broadcast %cst_33 : f32 to vector<1x16x1xf32>
    %84 = arith.divf %82, %83 : vector<1x16x1xf32>
    %85 = vector.broadcast %75 : vector<1x16x1xf32> to vector<1x16x128xf32>
    %86 = arith.subf %71, %85 : vector<1x16x128xf32>
    %cst_34 = arith.constant 9.99999974E-6 : f32
    %87 = vector.broadcast %cst_34 : f32 to vector<1x16x1xf32>
    %88 = arith.addf %84, %87 : vector<1x16x1xf32>
    %89 = math.rsqrt %88 : vector<1x16x1xf32>
    %90 = vector.broadcast %89 : vector<1x16x1xf32> to vector<1x16x128xf32>
    %91 = arith.mulf %86, %90 : vector<1x16x128xf32>
    %92 = vector.shape_cast %1 : vector<1x128xf32> to vector<1x1x128xf32>
    %93 = vector.broadcast %92 : vector<1x1x128xf32> to vector<1x16x128xf32>
    %94 = arith.mulf %91, %93 : vector<1x16x128xf32>
    %95 = vector.shape_cast %2 : vector<1x128xf32> to vector<1x1x128xf32>
    %96 = vector.broadcast %95 : vector<1x1x128xf32> to vector<1x16x128xf32>
    %97 = arith.addf %94, %96 : vector<1x16x128xf32>
    %c1_i32 = arith.constant 1 : i32
    %98 = arith.cmpi slt, %arg1, %c1_i32 : i32
    %cst_35 = arith.constant 0.000000e+00 : f32
    %99 = vector.broadcast %cst_35 : f32 to vector<1x16x128xf32>
    %100 = arith.select %98, %97, %99 : vector<1x16x128xf32>
    %cst_36 = arith.constant 0.000000e+00 : f32
    %101 = vector.broadcast %cst_36 : f32 to vector<1x1x128xf32>
    %102 = tpu.concatenate %101, %100, %101 in 1 : vector<1x1x128xf32>, vector<1x16x128xf32>, vector<1x1x128xf32> -> vector<1x18x128xf32>
    %c9 = arith.constant 9 : index
    %c0_37 = arith.constant 0 : index
    %c0_38 = arith.constant 0 : index
    %103 = vector.load %arg8[%c9, %c0_37, %c0_38] : memref<10x18x128xf32, #tpu.memory_space<vmem>>, vector<1x18x128xf32>
    tpu.vector_store %arg8[%c9, %c0_37, %c0_38], %102 {strides = array<i32>} : memref<10x18x128xf32, #tpu.memory_space<vmem>>, vector<1x18x128xf32>,
    %c0_39 = arith.constant 0 : index
    %c0_40 = arith.constant 0 : index
    %c0_41 = arith.constant 0 : index
    %104 = vector.load %arg8[%c0_39, %c0_40, %c0_41] : memref<10x18x128xf32, #tpu.memory_space<vmem>>, vector<8x16x128xf32>
    %105 = vector.extract_strided_slice %4 {offsets = [0, 0], sizes = [1, 128], strides = [1, 1]} : vector<9x128xf32> to vector<1x128xf32>
    %106 = vector.shape_cast %105 : vector<1x128xf32> to vector<1x1x128xf32>
    %107 = vector.broadcast %106 : vector<1x1x128xf32> to vector<8x16x128xf32>
    %108 = arith.mulf %104, %107 : vector<8x16x128xf32>
    %109 = vector.shape_cast %3 : vector<1x128xf32> to vector<1x1x128xf32>
    %110 = vector.broadcast %109 : vector<1x1x128xf32> to vector<8x16x128xf32>
    %111 = arith.addf %108, %110 : vector<8x16x128xf32>
    %c0_42 = arith.constant 0 : index
    %c1_43 = arith.constant 1 : index
    %c0_44 = arith.constant 0 : index
    %112 = vector.load %arg8[%c0_42, %c1_43, %c0_44] : memref<10x18x128xf32, #tpu.memory_space<vmem>>, vector<8x16x128xf32>
    %113 = vector.extract_strided_slice %4 {offsets = [1, 0], sizes = [1, 128], strides = [1, 1]} : vector<9x128xf32> to vector<1x128xf32>
    %114 = vector.shape_cast %113 : vector<1x128xf32> to vector<1x1x128xf32>
    %115 = vector.broadcast %114 : vector<1x1x128xf32> to vector<8x16x128xf32>
    %116 = arith.mulf %112, %115 : vector<8x16x128xf32>
    %117 = arith.addf %111, %116 : vector<8x16x128xf32>
    %c0_45 = arith.constant 0 : index
    %c2 = arith.constant 2 : index
    %c0_46 = arith.constant 0 : index
    %118 = vector.load %arg8[%c0_45, %c2, %c0_46] : memref<10x18x128xf32, #tpu.memory_space<vmem>>, vector<8x16x128xf32>
    %119 = vector.extract_strided_slice %4 {offsets = [2, 0], sizes = [1, 128], strides = [1, 1]} : vector<9x128xf32> to vector<1x128xf32>
    %120 = vector.shape_cast %119 : vector<1x128xf32> to vector<1x1x128xf32>
    %121 = vector.broadcast %120 : vector<1x1x128xf32> to vector<8x16x128xf32>
    %122 = arith.mulf %118, %121 : vector<8x16x128xf32>
    %123 = arith.addf %117, %122 : vector<8x16x128xf32>
    %c1_47 = arith.constant 1 : index
    %c0_48 = arith.constant 0 : index
    %c0_49 = arith.constant 0 : index
    %124 = vector.load %arg8[%c1_47, %c0_48, %c0_49] : memref<10x18x128xf32, #tpu.memory_space<vmem>>, vector<8x16x128xf32>
    %125 = vector.extract_strided_slice %4 {offsets = [3, 0], sizes = [1, 128], strides = [1, 1]} : vector<9x128xf32> to vector<1x128xf32>
    %126 = vector.shape_cast %125 : vector<1x128xf32> to vector<1x1x128xf32>
    %127 = vector.broadcast %126 : vector<1x1x128xf32> to vector<8x16x128xf32>
    %128 = arith.mulf %124, %127 : vector<8x16x128xf32>
    %129 = arith.addf %123, %128 : vector<8x16x128xf32>
    %c1_50 = arith.constant 1 : index
    %c1_51 = arith.constant 1 : index
    %c0_52 = arith.constant 0 : index
    %130 = vector.load %arg8[%c1_50, %c1_51, %c0_52] : memref<10x18x128xf32, #tpu.memory_space<vmem>>, vector<8x16x128xf32>
    %131 = vector.extract_strided_slice %4 {offsets = [4, 0], sizes = [1, 128], strides = [1, 1]} : vector<9x128xf32> to vector<1x128xf32>
    %132 = vector.shape_cast %131 : vector<1x128xf32> to vector<1x1x128xf32>
    %133 = vector.broadcast %132 : vector<1x1x128xf32> to vector<8x16x128xf32>
    %134 = arith.mulf %130, %133 : vector<8x16x128xf32>
    %135 = arith.addf %129, %134 : vector<8x16x128xf32>
    %c1_53 = arith.constant 1 : index
    %c2_54 = arith.constant 2 : index
    %c0_55 = arith.constant 0 : index
    %136 = vector.load %arg8[%c1_53, %c2_54, %c0_55] : memref<10x18x128xf32, #tpu.memory_space<vmem>>, vector<8x16x128xf32>
    %137 = vector.extract_strided_slice %4 {offsets = [5, 0], sizes = [1, 128], strides = [1, 1]} : vector<9x128xf32> to vector<1x128xf32>
    %138 = vector.shape_cast %137 : vector<1x128xf32> to vector<1x1x128xf32>
    %139 = vector.broadcast %138 : vector<1x1x128xf32> to vector<8x16x128xf32>
    %140 = arith.mulf %136, %139 : vector<8x16x128xf32>
    %141 = arith.addf %135, %140 : vector<8x16x128xf32>
    %c2_56 = arith.constant 2 : index
    %c0_57 = arith.constant 0 : index
    %c0_58 = arith.constant 0 : index
    %142 = vector.load %arg8[%c2_56, %c0_57, %c0_58] : memref<10x18x128xf32, #tpu.memory_space<vmem>>, vector<8x16x128xf32>
    %143 = vector.extract_strided_slice %4 {offsets = [6, 0], sizes = [1, 128], strides = [1, 1]} : vector<9x128xf32> to vector<1x128xf32>
    %144 = vector.shape_cast %143 : vector<1x128xf32> to vector<1x1x128xf32>
    %145 = vector.broadcast %144 : vector<1x1x128xf32> to vector<8x16x128xf32>
    %146 = arith.mulf %142, %145 : vector<8x16x128xf32>
    %147 = arith.addf %141, %146 : vector<8x16x128xf32>
    %c2_59 = arith.constant 2 : index
    %c1_60 = arith.constant 1 : index
    %c0_61 = arith.constant 0 : index
    %148 = vector.load %arg8[%c2_59, %c1_60, %c0_61] : memref<10x18x128xf32, #tpu.memory_space<vmem>>, vector<8x16x128xf32>
    %149 = vector.extract_strided_slice %4 {offsets = [7, 0], sizes = [1, 128], strides = [1, 1]} : vector<9x128xf32> to vector<1x128xf32>
    %150 = vector.shape_cast %149 : vector<1x128xf32> to vector<1x1x128xf32>
    %151 = vector.broadcast %150 : vector<1x1x128xf32> to vector<8x16x128xf32>
    %152 = arith.mulf %148, %151 : vector<8x16x128xf32>
    %153 = arith.addf %147, %152 : vector<8x16x128xf32>
    %c2_62 = arith.constant 2 : index
    %c2_63 = arith.constant 2 : index
    %c0_64 = arith.constant 0 : index
    %154 = vector.load %arg8[%c2_62, %c2_63, %c0_64] : memref<10x18x128xf32, #tpu.memory_space<vmem>>, vector<8x16x128xf32>
    %155 = vector.extract_strided_slice %4 {offsets = [8, 0], sizes = [1, 128], strides = [1, 1]} : vector<9x128xf32> to vector<1x128xf32>
    %156 = vector.shape_cast %155 : vector<1x128xf32> to vector<1x1x128xf32>
    %157 = vector.broadcast %156 : vector<1x1x128xf32> to vector<8x16x128xf32>
    %158 = arith.mulf %154, %157 : vector<8x16x128xf32>
    %159 = arith.addf %153, %158 : vector<8x16x128xf32>
    %c0_65 = arith.constant 0 : index
    %c0_66 = arith.constant 0 : index
    %c0_67 = arith.constant 0 : index
    %c0_68 = arith.constant 0 : index
    %160 = vector.load %arg2[%c0_65, %c0_66, %c0_67, %c0_68] : memref<1x8x16x128xf32, #tpu.memory_space<vmem>>, vector<1x8x16x128xf32>
    %161 = vector.shape_cast %160 : vector<1x8x16x128xf32> to vector<8x16x128xf32>
    %162 = arith.mulf %161, %159 : vector<8x16x128xf32>
    %c0_69 = arith.constant 0 : index
    %c0_70 = arith.constant 0 : index
    %c0_71 = arith.constant 0 : index
    %c0_72 = arith.constant 0 : index
    %163 = vector.load %arg7[%c0_69, %c0_70, %c0_71, %c0_72] : memref<1x8x16x128xf32, #tpu.memory_space<vmem>>, vector<1x8x16x128xf32>
    %164 = vector.shape_cast %163 : vector<1x8x16x128xf32> to vector<8x16x128xf32>
    %165 = vector.shape_cast %162 : vector<8x16x128xf32> to vector<1x8x16x128xf32>
    tpu.vector_store %arg7[%c0_69, %c0_70, %c0_71, %c0_72], %165 {strides = array<i32>} : memref<1x8x16x128xf32, #tpu.memory_space<vmem>>, vector<1x8x16x128xf32>,
    return
  }
  func.func @transform_0(%arg0: i32, %arg1: i32) -> (i32, i32, i32, i32) {
    %c0_i32 = arith.constant 0 : i32
    %c0_i32_0 = arith.constant 0 : i32
    %c0_i32_1 = arith.constant 0 : i32
    return %arg0, %arg1, %c0_i32, %c0_i32_0 : i32, i32, i32, i32
  }
  func.func @transform_1(%arg0: i32, %arg1: i32) -> (i32, i32, i32, i32) {
    %c0_i32 = arith.constant 0 : i32
    %c1_i32 = arith.constant 1 : i32
    %c0_i32_0 = arith.constant 0 : i32
    return %arg0, %arg1, %c0_i32, %c1_i32 : i32, i32, i32, i32
  }
  func.func @transform_2(%arg0: i32, %arg1: i32) -> (i32, i32, i32, i32) {
    %c8_i32 = arith.constant 8 : i32
    %0 = arith.muli %arg1, %c8_i32 : i32
    %c1_i32 = arith.constant 1 : i32
    %1 = arith.subi %0, %c1_i32 : i32
    %c0_i32 = arith.constant 0 : i32
    %2 = arith.maxsi %1, %c0_i32 : i32
    %c0_i32_0 = arith.constant 0 : i32
    %c1_i32_1 = arith.constant 1 : i32
    %c0_i32_2 = arith.constant 0 : i32
    return %arg0, %2, %c0_i32_0, %c1_i32_1 : i32, i32, i32, i32
  }
  func.func @transform_3(%arg0: i32, %arg1: i32) -> (i32, i32, i32, i32) {
    %c1_i32 = arith.constant 1 : i32
    %0 = arith.addi %arg1, %c1_i32 : i32
    %c8_i32 = arith.constant 8 : i32
    %1 = arith.muli %0, %c8_i32 : i32
    %c15_i32 = arith.constant 15 : i32
    %2 = arith.minsi %1, %c15_i32 : i32
    %c0_i32 = arith.constant 0 : i32
    %c1_i32_0 = arith.constant 1 : i32
    %c0_i32_1 = arith.constant 0 : i32
    return %arg0, %2, %c0_i32, %c1_i32_0 : i32, i32, i32, i32
  }
  func.func @transform_4(%arg0: i32, %arg1: i32) -> (i32, i32) {
    %c0_i32 = arith.constant 0 : i32
    %c0_i32_0 = arith.constant 0 : i32
    %c0_i32_1 = arith.constant 0 : i32
    return %c0_i32, %c0_i32_0 : i32, i32
  }
  func.func @transform_5(%arg0: i32, %arg1: i32) -> (i32, i32, i32, i32) {
    %c0_i32 = arith.constant 0 : i32
    %c0_i32_0 = arith.constant 0 : i32
    %c0_i32_1 = arith.constant 0 : i32
    return %arg0, %arg1, %c0_i32, %c0_i32_0 : i32, i32, i32, i32
  }
}

</mosaic_0001>

<llo_original>
// kernel: tpu_custom_call.1
$region0: #{tpu_custom_call.1}
  #allocation0 [shape = 'u32[]', space=smem, size = 0x4, offset = 0x4, fixed_abs, tag = 'smem constant byte address 0x4 - core index']
  #allocation1 [shape = 'u32[144,128]{1,0:T(1,128)}', space=vmem, size = 0x12000, scoped, tag = 'internal scratch']
  #allocation2 [shape = 'f32[10,18,128]{2,1,0:T(8,128)}', space=vmem, size = 0x1e000, scoped, tag = 'scratch operand']
  %s0 = inlined_call_operand.hbm [shape: f32[2,16,16,256], index: 0, kind: input, shape index: {}]
  %s1 = inlined_call_operand.hbm [shape: f32[2,16,16,256], index: 1, kind: input, shape index: {}]
  %s2 = inlined_call_operand.hbm [shape: f32[2,16,16,256], index: 2, kind: input, shape index: {}]
  %s3 = inlined_call_operand.hbm [shape: f32[2,16,16,256], index: 3, kind: input, shape index: {}]
  %s4 = inlined_call_operand.hbm [shape: f32[12,128], index: 4, kind: input, shape index: {}]
  %s5 = inlined_call_operand.hbm [shape: f32[2,16,16,128], index: 5, kind: output, shape index: {}]
  %s6 = sld [smem:[#allocation0]]
  $region73: #{tpu_custom_call.1} parent=0
    _
  %s8 = ssub.s32 1, %s6
  %s9 = scalar_select 0, %s8, %s6
  $region1: #{tpu_custom_call.1} parent=0
    #allocation3 [shape = 'u8[131072]{0}', space=vmem, size = 0x20000, scoped, tag = 'input window, operand 0']
    #allocation4 [shape = 's32[2]{0}', space=sflag, size = 0x8, scoped, tag = 'scoped memory for tpu_custom_call.1']
    #allocation5 [shape = 's32[2]{0}', space=sflag, size = 0x8, scoped, tag = 'scoped memory for tpu_custom_call.1']
    #allocation6 [shape = 'u8[131072]{0}', space=vmem, size = 0x20000, scoped, tag = 'input window, operand 1']
    #allocation7 [shape = 's32[2]{0}', space=sflag, size = 0x8, scoped, tag = 'scoped memory for tpu_custom_call.1']
    #allocation8 [shape = 'u8[16384]{0}', space=vmem, size = 0x4000, scoped, tag = 'input window, operand 2']
    #allocation9 [shape = 'u8[16384]{0}', space=vmem, size = 0x4000, scoped, tag = 'input window, operand 3']
    #allocation10 [shape = 's32[2]{0}', space=sflag, size = 0x8, scoped, tag = 'scoped memory for tpu_custom_call.1']
    #allocation11 [shape = 'u8[8192]{0}', space=vmem, size = 0x2000, scoped, tag = 'input window, operand 4, single buffered']
    #allocation12 [shape = 'u8[131072]{0}', space=vmem, size = 0x20000, scoped, tag = 'output window, operand 0']
    %10 = vsyncpa [#allocation4], 0
    %s11 = scalar_lea.sflag [#allocation4], 1
    %12 = vsyncpa %s11, 0
    %13 = vsyncpa [#allocation7], 0
    %s14 = scalar_lea.sflag [#allocation7], 1
    %15 = vsyncpa %s14, 0
    %16 = vsyncpa [#allocation10], 0
    %s17 = scalar_lea.sflag [#allocation10], 1
    %18 = vsyncpa %s17, 0
    %19 = vsyncpa [#allocation5], 0
    %s20 = scalar_lea.sflag [#allocation5], 1
    %21 = vsyncpa %s20, 0
    loop: start=0, step=1, limit=6
    $region2: #{tpu_custom_call.1} parent=1 // loop_pre_header
      _
    $region3: #{tpu_custom_call.1} parent=1 // loop_header
      %s23 = sphi 0, %s27
      %p24 = scmp.ge.s32.totalorder %s23, 6
      %s30 = sphi 0, %s42
      %s31 = sphi 0, %s38
      %s32 = sphi 0, %s30
      %s33 = sphi 0, %s31
      %s34 = sphi 0, %s32
      %s35 = sphi 0, %s33
      %s47 = sphi 0, %s49
      %s50 = sphi 0, %s47
      %s51 = sphi 0, %s50
      %s67 = sphi 0, %s51
      %s75 = sphi 0, %s77
      %s78 = sphi 0, %s75
      %s79 = sphi 0, %s78
      %s95 = sphi 0, %s79
      %s111 = sphi 0, %s113
      %s114 = sphi 0, %s111
      %s115 = sphi 0, %s114
      %s131 = sphi 0, %s115
      %s147 = sphi 0, %s149
      %s150 = sphi 0, %s147
      %s151 = sphi 0, %s150
      %s167 = sphi 0, %s151
      %s171 = sphi 0, %s171
      %s173 = sphi 0, %s171
      %s174 = sphi 0, %s173
      %s188 = sphi 0, %s174
      %s196 = sphi 0, %s198
      %s199 = sphi 0, %s196
      %s200 = sphi 0, %s199
      %s216 = sphi 0, %s200
    $region4: #{tpu_custom_call.1} parent=1 // loop_header_branch
      %26 = sbr.rel (%p24) target = $region8
    $region5: #{tpu_custom_call.1} parent=1 // loop_body
      %s28 = ssub.s32 %s23, 1
      %s29 = ssub.s32 %s23, 2
      %s36 = sadd.s32 1, %s31
      %p37 = scmp.ge.s32.totalorder %s36, 2
      %s38 = scalar_select %p37, 0, %s36
      %s39 = sadd.s32 1, %s30
      %s40 = scalar_select %p37, %s39, %s30
      %p41 = scmp.ge.s32.totalorder %s40, 2
      %s42 = scalar_select %p41, 0, %s40
      %s43 = ssub.s32 %s30, %s42
      %s44 = ssub.s32 %s31, %s38
      %s45 = sor.u32 %s43, %s44
      %p46 = scmp.eq.s32.totalorder %s45, 0
      %s48 = sadd.s32 %s47, 1
      %s49 = scalar_select %p46, %s47, %s48
      %p52 = pneg %p46
      %p53 = scmp.eq.s32.totalorder %s23, 3
      %p54 = por %p52, %p53
      %p55 = scmp.ne.s32.totalorder %s47, %s50
      %p56 = scmp.eq.s32.totalorder %s23, 0
      %p57 = por %p55, %p56
      %p58 = scmp.ne.s32.totalorder %s47, %s50
      %p59 = scmp.eq.s32.totalorder %s28, 3
      %p60 = por %p58, %p59
      %p61 = scmp.ne.s32.totalorder %s50, %s51
      %p62 = scmp.eq.s32.totalorder %s28, 0
      %p63 = por %p61, %p62
      %p64 = scmp.ne.s32.totalorder %s50, %s51
      %p65 = scmp.eq.s32.totalorder %s29, 3
      %p66 = por %p64, %p65
      %p68 = scmp.ne.s32.totalorder %s51, %s67
      %p69 = scmp.eq.s32.totalorder %s29, 0
      %p70 = por %p68, %p69
      %s71 = ssub.s32 %s30, %s42
      %s72 = ssub.s32 %s31, %s38
      %s73 = sor.u32 %s71, %s72
      %p74 = scmp.eq.s32.totalorder %s73, 0
      %s76 = sadd.s32 %s75, 1
      %s77 = scalar_select %p74, %s75, %s76
      %p80 = pneg %p74
      %p81 = scmp.eq.s32.totalorder %s23, 3
      %p82 = por %p80, %p81
      %p83 = scmp.ne.s32.totalorder %s75, %s78
      %p84 = scmp.eq.s32.totalorder %s23, 0
      %p85 = por %p83, %p84
      %p86 = scmp.ne.s32.totalorder %s75, %s78
      %p87 = scmp.eq.s32.totalorder %s28, 3
      %p88 = por %p86, %p87
      %p89 = scmp.ne.s32.totalorder %s78, %s79
      %p90 = scmp.eq.s32.totalorder %s28, 0
      %p91 = por %p89, %p90
      %p92 = scmp.ne.s32.totalorder %s78, %s79
      %p93 = scmp.eq.s32.totalorder %s29, 3
      %p94 = por %p92, %p93
      %p96 = scmp.ne.s32.totalorder %s79, %s95
      %p97 = scmp.eq.s32.totalorder %s29, 0
      %p98 = por %p96, %p97
      %s99 = smul.u32 %s31, 8
      %s100 = ssub.s32 %s99, 1
      %p101 = scmp.gt.s32.totalorder %s100, 0
      %s102 = scalar_select %p101, %s100, 0
      %s103 = smul.u32 %s38, 8
      %s104 = ssub.s32 %s103, 1
      %p105 = scmp.gt.s32.totalorder %s104, 0
      %s106 = scalar_select %p105, %s104, 0
      %s107 = ssub.s32 %s30, %s42
      %s108 = ssub.s32 %s102, %s106
      %s109 = sor.u32 %s107, %s108
      %p110 = scmp.eq.s32.totalorder %s109, 0
      %s112 = sadd.s32 %s111, 1
      %s113 = scalar_select %p110, %s111, %s112
      %p116 = pneg %p110
      %p117 = scmp.eq.s32.totalorder %s23, 3
      %p118 = por %p116, %p117
      %p119 = scmp.ne.s32.totalorder %s111, %s114
      %p120 = scmp.eq.s32.totalorder %s23, 0
      %p121 = por %p119, %p120
      %p122 = scmp.ne.s32.totalorder %s111, %s114
      %p123 = scmp.eq.s32.totalorder %s28, 3
      %p124 = por %p122, %p123
      %p125 = scmp.ne.s32.totalorder %s114, %s115
      %p126 = scmp.eq.s32.totalorder %s28, 0
      %p127 = por %p125, %p126
      %p128 = scmp.ne.s32.totalorder %s114, %s115
      %p129 = scmp.eq.s32.totalorder %s29, 3
      %p130 = por %p128, %p129
      %p132 = scmp.ne.s32.totalorder %s115, %s131
      %p133 = scmp.eq.s32.totalorder %s29, 0
      %p134 = por %p132, %p133
      %s135 = sadd.s32 %s31, 1
      %s136 = smul.u32 %s135, 8
      %p137 = scmp.lt.s32.totalorder %s136, 15
      %s138 = scalar_select %p137, %s136, 15
      %s139 = sadd.s32 %s38, 1
      %s140 = smul.u32 %s139, 8
      %p141 = scmp.lt.s32.totalorder %s140, 15
      %s142 = scalar_select %p141, %s140, 15
      %s143 = ssub.s32 %s30, %s42
      %s144 = ssub.s32 %s138, %s142
      %s145 = sor.u32 %s143, %s144
      %p146 = scmp.eq.s32.totalorder %s145, 0
      %s148 = sadd.s32 %s147, 1
      %s149 = scalar_select %p146, %s147, %s148
      %p152 = pneg %p146
      %p153 = scmp.eq.s32.totalorder %s23, 3
      %p154 = por %p152, %p153
      %p155 = scmp.ne.s32.totalorder %s147, %s150
      %p156 = scmp.eq.s32.totalorder %s23, 0
      %p157 = por %p155, %p156
      %p158 = scmp.ne.s32.totalorder %s147, %s150
      %p159 = scmp.eq.s32.totalorder %s28, 3
      %p160 = por %p158, %p159
      %p161 = scmp.ne.s32.totalorder %s150, %s151
      %p162 = scmp.eq.s32.totalorder %s28, 0
      %p163 = por %p161, %p162
      %p164 = scmp.ne.s32.totalorder %s150, %s151
      %p165 = scmp.eq.s32.totalorder %s29, 3
      %p166 = por %p164, %p165
      %p168 = scmp.ne.s32.totalorder %s151, %s167
      %p169 = scmp.eq.s32.totalorder %s29, 0
      %p170 = por %p168, %p169
      %s172 = sadd.s32 %s171, 1
      %p175 = scmp.eq.s32.totalorder %s23, 3
      %p176 = scmp.ne.s32.totalorder %s171, %s173
      %p177 = scmp.eq.s32.totalorder %s23, 0
      %p178 = por %p176, %p177
      %p179 = scmp.ne.s32.totalorder %s171, %s173
      %p180 = scmp.eq.s32.totalorder %s28, 3
      %p181 = por %p179, %p180
      %p182 = scmp.ne.s32.totalorder %s173, %s174
      %p183 = scmp.eq.s32.totalorder %s28, 0
      %p184 = por %p182, %p183
      %p185 = scmp.ne.s32.totalorder %s173, %s174
      %p186 = scmp.eq.s32.totalorder %s29, 3
      %p187 = por %p185, %p186
      %p189 = scmp.ne.s32.totalorder %s174, %s188
      %p190 = scmp.eq.s32.totalorder %s29, 0
      %p191 = por %p189, %p190
      %s192 = ssub.s32 %s30, %s42
      %s193 = ssub.s32 %s31, %s38
      %s194 = sor.u32 %s192, %s193
      %p195 = scmp.eq.s32.totalorder %s194, 0
      %s197 = sadd.s32 %s196, 1
      %s198 = scalar_select %p195, %s196, %s197
      %p201 = pneg %p195
      %p202 = scmp.eq.s32.totalorder %s23, 3
      %p203 = por %p201, %p202
      %p204 = scmp.ne.s32.totalorder %s196, %s199
      %p205 = scmp.eq.s32.totalorder %s23, 0
      %p206 = por %p204, %p205
      %p207 = scmp.ne.s32.totalorder %s196, %s199
      %p208 = scmp.eq.s32.totalorder %s28, 3
      %p209 = por %p207, %p208
      %p210 = scmp.ne.s32.totalorder %s199, %s200
      %p211 = scmp.eq.s32.totalorder %s28, 0
      %p212 = por %p210, %p211
      %p213 = scmp.ne.s32.totalorder %s199, %s200
      %p214 = scmp.eq.s32.totalorder %s29, 3
      %p215 = por %p213, %p214
      %p217 = scmp.ne.s32.totalorder %s200, %s216
      %p218 = scmp.eq.s32.totalorder %s29, 0
      %p219 = por %p217, %p218
      %p220 = scmp.le.s32.totalorder 1, %s23
      %p221 = scmp.lt.s32.totalorder %s23, 5
      %p222 = pnand %p220, %p221
      %p223 = pneg %p222
      // Predicated region
      $region9: #{tpu_custom_call.1} parent=5 // pred_check
        _
      $region10: #{tpu_custom_call.1} parent=5 // pred_check_branch
        %225 = sbr.rel (%p222) target = $region12
      $region11: #{tpu_custom_call.1} parent=5 // pred_region
        %s226 = ssub.s32 %s23, 1
        // Predicated region
        $region13: #{tpu_custom_call.1} parent=11 // pred_check
          %p227 = pneg %p184
        $region14: #{tpu_custom_call.1} parent=11 // pred_check_branch
          %229 = sbr.rel (%p227) target = $region16
        $region15: #{tpu_custom_call.1} parent=11 // pred_region
          %s231 = ssub.s32 256, 256
          %232 = vsyncadd [#allocation10], %s231
          %s233 = sshll.u32 [#allocation11], 4
          %s234 = int_to_ptr.vmem [resolvable:$true] %s233
          %239 = dma.hbm_to_vmem [thread:$0]  %s4, 256, %s234, [#allocation10], 128, 128, 8
        $region16: #{tpu_custom_call.1} parent=11 // pred_fallthru
          _
      $region12: #{tpu_custom_call.1} parent=5 // pred_fallthru
        _
      %p240 = scmp.lt.s32.totalorder %s23, 4
      // Predicated region
      $region17: #{tpu_custom_call.1} parent=5 // pred_check
        %p241 = pneg %p240
      $region18: #{tpu_custom_call.1} parent=5 // pred_check_branch
        %243 = sbr.rel (%p241) target = $region20
      $region19: #{tpu_custom_call.1} parent=5 // pred_region
        // Predicated region
        $region21: #{tpu_custom_call.1} parent=19 // pred_check
          %p244 = pneg %p57
        $region22: #{tpu_custom_call.1} parent=19 // pred_check_branch
          %246 = sbr.rel (%p244) target = $region24
        $region23: #{tpu_custom_call.1} parent=19 // pred_region
          %s247 = sand.u32 %s47, 1
          %s248 = scalar_lea.sflag [#allocation4], %s247
          %s249 = sand.u32 %s47, 1
          %s250 = smul.addr %s249, 128
          %s251 = scalar_lea.vmem [#allocation3], %s250
          %s252 = smul.u32 8, %s31
          %s254 = ssub.s32 2048, 2048
          %255 = vsyncadd %s248, %s254
          %s256 = smul.addr %s252, 4
          %s257 = smul.addr %s30, 64
          %s258 = sadd.s32 %s256, %s257
          %s259 = smul.addr %s258, 128
          %s260 = scalar_lea.hbm %s0, %s259
          %s261 = sshll.u32 %s251, 4
          %s262 = int_to_ptr.vmem [resolvable:$true] %s261
          %267 = dma.hbm_to_vmem [thread:$0]  %s260, 2048, %s262, %s248, 256, 128, 8
        $region24: #{tpu_custom_call.1} parent=19 // pred_fallthru
          _
        // Predicated region
        $region25: #{tpu_custom_call.1} parent=19 // pred_check
          %p268 = pneg %p85
        $region26: #{tpu_custom_call.1} parent=19 // pred_check_branch
          %270 = sbr.rel (%p268) target = $region28
        $region27: #{tpu_custom_call.1} parent=19 // pred_region
          %s271 = sand.u32 %s23, 1
          %s272 = scalar_lea.sflag [#allocation7], %s271
          %s273 = sand.u32 %s75, 1
          %s274 = smul.addr %s273, 128
          %s275 = scalar_lea.vmem [#allocation6], %s274
          %s276 = smul.u32 8, %s31
          %s278 = ssub.s32 2048, 2048
          %279 = vsyncadd %s272, %s278
          %s280 = smul.addr %s276, 4
          %s281 = sadd.s32 1, %s280
          %s282 = smul.addr %s30, 64
          %s283 = sadd.s32 %s281, %s282
          %s284 = smul.addr %s283, 128
          %s285 = scalar_lea.hbm %s1, %s284
          %s286 = sshll.u32 %s275, 4
          %s287 = int_to_ptr.vmem [resolvable:$true] %s286
          %292 = dma.hbm_to_vmem [thread:$0]  %s285, 2048, %s287, %s272, 256, 128, 8
        $region28: #{tpu_custom_call.1} parent=19 // pred_fallthru
          _
        // Predicated region
        $region29: #{tpu_custom_call.1} parent=19 // pred_check
          %p293 = pneg %p121
        $region30: #{tpu_custom_call.1} parent=19 // pred_check_branch
          %295 = sbr.rel (%p293) target = $region32
        $region31: #{tpu_custom_call.1} parent=19 // pred_region
          %s296 = sand.u32 %s23, 1
          %s297 = scalar_lea.sflag [#allocation7], %s296
          %s298 = sand.u32 %s111, 1
          %s299 = smul.addr %s298, 16
          %s300 = scalar_lea.vmem [#allocation8], %s299
          %s301 = smul.u32 %s31, 8
          %s302 = ssub.s32 %s301, 1
          %p303 = scmp.gt.s32.totalorder %s302, 0
          %s304 = scalar_select %p303, %s302, 0
          %s306 = ssub.s32 256, 256
          %307 = vsyncadd %s297, %s306
          %s308 = smul.addr %s304, 4
          %s309 = sadd.s32 1, %s308
          %s310 = smul.addr %s30, 64
          %s311 = sadd.s32 %s309, %s310
          %s312 = smul.addr %s311, 128
          %s313 = scalar_lea.hbm %s2, %s312
          %s314 = sshll.u32 %s300, 4
          %s315 = int_to_ptr.vmem [resolvable:$true] %s314
          %320 = dma.hbm_to_vmem [thread:$0]  %s313, 256, %s315, %s297, 256, 128, 8
        $region32: #{tpu_custom_call.1} parent=19 // pred_fallthru
          _
        // Predicated region
        $region33: #{tpu_custom_call.1} parent=19 // pred_check
          %p321 = pneg %p157
        $region34: #{tpu_custom_call.1} parent=19 // pred_check_branch
          %323 = sbr.rel (%p321) target = $region36
        $region35: #{tpu_custom_call.1} parent=19 // pred_region
          %s324 = sand.u32 %s23, 1
          %s325 = scalar_lea.sflag [#allocation10], %s324
          %s326 = sand.u32 %s147, 1
          %s327 = smul.addr %s326, 16
          %s328 = scalar_lea.vmem [#allocation9], %s327
          %s329 = sadd.s32 %s31, 1
          %s330 = smul.u32 %s329, 8
          %p331 = scmp.lt.s32.totalorder %s330, 15
          %s332 = scalar_select %p331, %s330, 15
          %s334 = ssub.s32 256, 256
          %335 = vsyncadd %s325, %s334
          %s336 = smul.addr %s332, 4
          %s337 = sadd.s32 1, %s336
          %s338 = smul.addr %s30, 64
          %s339 = sadd.s32 %s337, %s338
          %s340 = smul.addr %s339, 128
          %s341 = scalar_lea.hbm %s3, %s340
          %s342 = sshll.u32 %s328, 4
          %s343 = int_to_ptr.vmem [resolvable:$true] %s342
          %348 = dma.hbm_to_vmem [thread:$0]  %s341, 256, %s343, %s325, 256, 128, 8
        $region36: #{tpu_custom_call.1} parent=19 // pred_fallthru
          _
      $region20: #{tpu_custom_call.1} parent=5 // pred_fallthru
        _
      %p349 = scmp.le.s32.totalorder 1, %s23
      %p350 = scmp.lt.s32.totalorder %s23, 5
      %p351 = pnand %p349, %p350
      %p352 = pneg %p351
      // Predicated region
      $region37: #{tpu_custom_call.1} parent=5 // pred_check
        _
      $region38: #{tpu_custom_call.1} parent=5 // pred_check_branch
        %354 = sbr.rel (%p351) target = $region40
      $region39: #{tpu_custom_call.1} parent=5 // pred_region
        %s355 = ssub.s32 %s23, 1
        %s356 = sand.u32 %s50, 1
        %s357 = scalar_lea.sflag [#allocation4], %s356
        %s358 = sand.u32 %s50, 1
        %s359 = smul.addr %s358, 128
        %s360 = scalar_lea.vmem [#allocation3], %s359
        // Predicated region
        $region41: #{tpu_custom_call.1} parent=39 // pred_check
          %p361 = pneg %p63
        $region42: #{tpu_custom_call.1} parent=39 // pred_check_branch
          %363 = sbr.rel (%p361) target = $region44
        $region43: #{tpu_custom_call.1} parent=39 // pred_region
          %364 = dma.done %s357, 2048
        $region44: #{tpu_custom_call.1} parent=39 // pred_fallthru
          _
        %s365 = sand.u32 %s28, 1
        %s366 = scalar_lea.sflag [#allocation7], %s365
        %s367 = sand.u32 %s78, 1
        %s368 = smul.addr %s367, 128
        %s369 = scalar_lea.vmem [#allocation6], %s368
        // Predicated region
        $region45: #{tpu_custom_call.1} parent=39 // pred_check
          %p370 = pneg %p91
        $region46: #{tpu_custom_call.1} parent=39 // pred_check_branch
          %372 = sbr.rel (%p370) target = $region48
        $region47: #{tpu_custom_call.1} parent=39 // pred_region
          %373 = dma.done %s366, 2048
        $region48: #{tpu_custom_call.1} parent=39 // pred_fallthru
          _
        %s374 = sand.u32 %s28, 1
        %s375 = scalar_lea.sflag [#allocation7], %s374
        %s376 = sand.u32 %s114, 1
        %s377 = smul.addr %s376, 16
        %s378 = scalar_lea.vmem [#allocation8], %s377
        // Predicated region
        $region49: #{tpu_custom_call.1} parent=39 // pred_check
          %p379 = pneg %p127
        $region50: #{tpu_custom_call.1} parent=39 // pred_check_branch
          %381 = sbr.rel (%p379) target = $region52
        $region51: #{tpu_custom_call.1} parent=39 // pred_region
          %382 = dma.done %s375, 256
        $region52: #{tpu_custom_call.1} parent=39 // pred_fallthru
          _
        %s383 = sand.u32 %s28, 1
        %s384 = scalar_lea.sflag [#allocation10], %s383
        %s385 = sand.u32 %s150, 1
        %s386 = smul.addr %s385, 16
        %s387 = scalar_lea.vmem [#allocation9], %s386
        // Predicated region
        $region53: #{tpu_custom_call.1} parent=39 // pred_check
          %p388 = pneg %p163
        $region54: #{tpu_custom_call.1} parent=39 // pred_check_branch
          %390 = sbr.rel (%p388) target = $region56
        $region55: #{tpu_custom_call.1} parent=39 // pred_region
          %391 = dma.done %s384, 256
        $region56: #{tpu_custom_call.1} parent=39 // pred_fallthru
          _
        // Predicated region
        $region57: #{tpu_custom_call.1} parent=39 // pred_check
          %p392 = pneg %p184
        $region58: #{tpu_custom_call.1} parent=39 // pred_check_branch
          %394 = sbr.rel (%p392) target = $region60
        $region59: #{tpu_custom_call.1} parent=39 // pred_region
          %395 = dma.done [#allocation10], 256
        $region60: #{tpu_custom_call.1} parent=39 // pred_fallthru
          _
        %s396 = sand.u32 %s50, 1
        %s397 = scalar_lea.sflag [#allocation4], %s396
        %s398 = sand.u32 %s50, 1
        %s399 = smul.addr %s398, 128
        %s400 = scalar_lea.vmem [#allocation3], %s399
        %p401 = pneg %p63
        %p402 = pneg %p60
        %s403 = sand.u32 %s28, 1
        %s404 = scalar_lea.sflag [#allocation7], %s403
        %s405 = sand.u32 %s78, 1
        %s406 = smul.addr %s405, 128
        %s407 = scalar_lea.vmem [#allocation6], %s406
        %p408 = pneg %p91
        %p409 = pneg %p88
        %s410 = sand.u32 %s28, 1
        %s411 = scalar_lea.sflag [#allocation7], %s410
        %s412 = sand.u32 %s114, 1
        %s413 = smul.addr %s412, 16
        %s414 = scalar_lea.vmem [#allocation8], %s413
        %p415 = pneg %p127
        %p416 = pneg %p124
        %s417 = sand.u32 %s28, 1
        %s418 = scalar_lea.sflag [#allocation10], %s417
        %s419 = sand.u32 %s150, 1
        %s420 = smul.addr %s419, 16
        %s421 = scalar_lea.vmem [#allocation9], %s420
        %p422 = pneg %p163
        %p423 = pneg %p160
        %p424 = pneg %p184
        %p425 = pneg %p181
        %p426 = pneg %p212
        %p427 = pneg %p209
        %s428 = sand.u32 %s199, 1
        %s429 = scalar_lea.sflag [#allocation5], %s428
        %s430 = sand.u32 %s199, 1
        %s431 = smul.addr %s430, 128
        %s432 = scalar_lea.vmem [#allocation12], %s431
        %s433 = smul.u32 8, %s33
        %s434 = smul.u32 8, %s33
        %s435 = smul.u32 %s33, 8
        %s436 = ssub.s32 %s435, 1
        %p437 = scmp.gt.s32.totalorder %s436, 0
        %s438 = scalar_select %p437, %s436, 0
        %s439 = sadd.s32 %s33, 1
        %s440 = smul.u32 %s439, 8
        %p441 = scmp.lt.s32.totalorder %s440, 15
        %s442 = scalar_select %p441, %s440, 15
        %s443 = smul.u32 8, %s33
        %v444 = vld [vmem:[#allocation11] sm:$0xff]
        %v445 = vld [vmem:[#allocation11 + $0x8] sm:$0xf]
        %v446 = vld [vmem:[%s369] sm:$0xff]
        %v447 = vld [vmem:[%s369 + $0x8] sm:$0xff]
        %v448 = vld [vmem:[%s369 + $0x10] sm:$0xff]
        %v449 = vld [vmem:[%s369 + $0x18] sm:$0xff]
        %v450 = vld [vmem:[%s369 + $0x20] sm:$0xff]
        %v451 = vld [vmem:[%s369 + $0x28] sm:$0xff]
        %v452 = vld [vmem:[%s369 + $0x30] sm:$0xff]
        %v453 = vld [vmem:[%s369 + $0x38] sm:$0xff]
        %v454 = vld [vmem:[%s369 + $0x40] sm:$0xff]
        %v455 = vld [vmem:[%s369 + $0x48] sm:$0xff]
        %v456 = vld [vmem:[%s369 + $0x50] sm:$0xff]
        %v457 = vld [vmem:[%s369 + $0x58] sm:$0xff]
        %v458 = vld [vmem:[%s369 + $0x60] sm:$0xff]
        %v459 = vld [vmem:[%s369 + $0x68] sm:$0xff]
        %v460 = vld [vmem:[%s369 + $0x70] sm:$0xff]
        %v461 = vld [vmem:[%s369 + $0x78] sm:$0xff]
        %462 = vadd.xlane.f32.xlu0 %v446
        %v463 = vpop.xlane.xlu0 %462
        %464 = vadd.xlane.f32.xlu0 %v447
        %v465 = vpop.xlane.xlu0 %464
        %466 = vadd.xlane.f32.xlu0 %v448
        %v467 = vpop.xlane.xlu0 %466
        %468 = vadd.xlane.f32.xlu0 %v449
        %v469 = vpop.xlane.xlu0 %468
        %470 = vadd.xlane.f32.xlu0 %v450
        %v471 = vpop.xlane.xlu0 %470
        %472 = vadd.xlane.f32.xlu0 %v451
        %v473 = vpop.xlane.xlu0 %472
        %474 = vadd.xlane.f32.xlu0 %v452
        %v475 = vpop.xlane.xlu0 %474
        %476 = vadd.xlane.f32.xlu0 %v453
        %v477 = vpop.xlane.xlu0 %476
        %478 = vadd.xlane.f32.xlu0 %v454
        %v479 = vpop.xlane.xlu0 %478
        %480 = vadd.xlane.f32.xlu0 %v455
        %v481 = vpop.xlane.xlu0 %480
        %482 = vadd.xlane.f32.xlu0 %v456
        %v483 = vpop.xlane.xlu0 %482
        %484 = vadd.xlane.f32.xlu0 %v457
        %v485 = vpop.xlane.xlu0 %484
        %486 = vadd.xlane.f32.xlu0 %v458
        %v487 = vpop.xlane.xlu0 %486
        %488 = vadd.xlane.f32.xlu0 %v459
        %v489 = vpop.xlane.xlu0 %488
        %490 = vadd.xlane.f32.xlu0 %v460
        %v491 = vpop.xlane.xlu0 %490
        %492 = vadd.xlane.f32.xlu0 %v461
        %v493 = vpop.xlane.xlu0 %492
        %v494 = vrcp.pop 128.0
        %v495 = vmul.f32 %v463, %v494
        %v496 = vmul.f32 %v465, %v494
        %v497 = vmul.f32 %v467, %v494
        %v498 = vmul.f32 %v469, %v494
        %v499 = vmul.f32 %v471, %v494
        %v500 = vmul.f32 %v473, %v494
        %v501 = vmul.f32 %v475, %v494
        %v502 = vmul.f32 %v477, %v494
        %v503 = vmul.f32 %v479, %v494
        %v504 = vmul.f32 %v481, %v494
        %v505 = vmul.f32 %v483, %v494
        %v506 = vmul.f32 %v485, %v494
        %v507 = vmul.f32 %v487, %v494
        %v508 = vmul.f32 %v489, %v494
        %v509 = vmul.f32 %v491, %v494
        %v510 = vmul.f32 %v493, %v494
        %v511 = vsub.f32 %v446, %v495
        %v512 = vsub.f32 %v447, %v496
        %v513 = vsub.f32 %v448, %v497
        %v514 = vsub.f32 %v449, %v498
        %v515 = vsub.f32 %v450, %v499
        %v516 = vsub.f32 %v451, %v500
        %v517 = vsub.f32 %v452, %v501
        %v518 = vsub.f32 %v453, %v502
        %v519 = vsub.f32 %v454, %v503
        %v520 = vsub.f32 %v455, %v504
        %v521 = vsub.f32 %v456, %v505
        %v522 = vsub.f32 %v457, %v506
        %v523 = vsub.f32 %v458, %v507
        %v524 = vsub.f32 %v459, %v508
        %v525 = vsub.f32 %v460, %v509
        %v526 = vsub.f32 %v461, %v510
        %v527 = vmul.f32 %v511, %v511
        %v528 = vmul.f32 %v512, %v512
        %v529 = vmul.f32 %v513, %v513
        %v530 = vmul.f32 %v514, %v514
        %v531 = vmul.f32 %v515, %v515
        %v532 = vmul.f32 %v516, %v516
        %v533 = vmul.f32 %v517, %v517
        %v534 = vmul.f32 %v518, %v518
        %v535 = vmul.f32 %v519, %v519
        %v536 = vmul.f32 %v520, %v520
        %v537 = vmul.f32 %v521, %v521
        %v538 = vmul.f32 %v522, %v522
        %v539 = vmul.f32 %v523, %v523
        %v540 = vmul.f32 %v524, %v524
        %v541 = vmul.f32 %v525, %v525
        %v542 = vmul.f32 %v526, %v526
        %543 = vadd.xlane.f32.xlu0 %v527
        %v544 = vpop.xlane.xlu0 %543
        %545 = vadd.xlane.f32.xlu0 %v528
        %v546 = vpop.xlane.xlu0 %545
        %547 = vadd.xlane.f32.xlu0 %v529
        %v548 = vpop.xlane.xlu0 %547
        %549 = vadd.xlane.f32.xlu0 %v530
        %v550 = vpop.xlane.xlu0 %549
        %551 = vadd.xlane.f32.xlu0 %v531
        %v552 = vpop.xlane.xlu0 %551
        %553 = vadd.xlane.f32.xlu0 %v532
        %v554 = vpop.xlane.xlu0 %553
        %555 = vadd.xlane.f32.xlu0 %v533
        %v556 = vpop.xlane.xlu0 %555
        %557 = vadd.xlane.f32.xlu0 %v534
        %v558 = vpop.xlane.xlu0 %557
        %559 = vadd.xlane.f32.xlu0 %v535
        %v560 = vpop.xlane.xlu0 %559
        %561 = vadd.xlane.f32.xlu0 %v536
        %v562 = vpop.xlane.xlu0 %561
        %563 = vadd.xlane.f32.xlu0 %v537
        %v564 = vpop.xlane.xlu0 %563
        %565 = vadd.xlane.f32.xlu0 %v538
        %v566 = vpop.xlane.xlu0 %565
        %567 = vadd.xlane.f32.xlu0 %v539
        %v568 = vpop.xlane.xlu0 %567
        %569 = vadd.xlane.f32.xlu0 %v540
        %v570 = vpop.xlane.xlu0 %569
        %571 = vadd.xlane.f32.xlu0 %v541
        %v572 = vpop.xlane.xlu0 %571
        %573 = vadd.xlane.f32.xlu0 %v542
        %v574 = vpop.xlane.xlu0 %573
        %v575 = vmul.f32 %v544, %v494
        %v576 = vmul.f32 %v546, %v494
        %v577 = vmul.f32 %v548, %v494
        %v578 = vmul.f32 %v550, %v494
        %v579 = vmul.f32 %v552, %v494
        %v580 = vmul.f32 %v554, %v494
        %v581 = vmul.f32 %v556, %v494
        %v582 = vmul.f32 %v558, %v494
        %v583 = vmul.f32 %v560, %v494
        %v584 = vmul.f32 %v562, %v494
        %v585 = vmul.f32 %v564, %v494
        %v586 = vmul.f32 %v566, %v494
        %v587 = vmul.f32 %v568, %v494
        %v588 = vmul.f32 %v570, %v494
        %v589 = vmul.f32 %v572, %v494
        %v590 = vmul.f32 %v574, %v494
        %v591 = vadd.f32 %v575, 1e-05
        %v592 = vadd.f32 %v576, 1e-05
        %v593 = vadd.f32 %v577, 1e-05
        %v594 = vadd.f32 %v578, 1e-05
        %v595 = vadd.f32 %v579, 1e-05
        %v596 = vadd.f32 %v580, 1e-05
        %v597 = vadd.f32 %v581, 1e-05
        %v598 = vadd.f32 %v582, 1e-05
        %v599 = vadd.f32 %v583, 1e-05
        %v600 = vadd.f32 %v584, 1e-05
        %v601 = vadd.f32 %v585, 1e-05
        %v602 = vadd.f32 %v586, 1e-05
        %v603 = vadd.f32 %v587, 1e-05
        %v604 = vadd.f32 %v588, 1e-05
        %v605 = vadd.f32 %v589, 1e-05
        %v606 = vadd.f32 %v590, 1e-05
        %v607 = vrsqrt.pop %v591
        %v608 = vrsqrt.pop %v592
        %v609 = vrsqrt.pop %v593
        %v610 = vrsqrt.pop %v594
        %v611 = vrsqrt.pop %v595
        %v612 = vrsqrt.pop %v596
        %v613 = vrsqrt.pop %v597
        %v614 = vrsqrt.pop %v598
        %v615 = vrsqrt.pop %v599
        %v616 = vrsqrt.pop %v600
        %v617 = vrsqrt.pop %v601
        %v618 = vrsqrt.pop %v602
        %v619 = vrsqrt.pop %v603
        %v620 = vrsqrt.pop %v604
        %v621 = vrsqrt.pop %v605
        %v622 = vrsqrt.pop %v606
        %v623 = vmul.f32 %v511, %v607
        %v624 = vmul.f32 %v512, %v608
        %v625 = vmul.f32 %v513, %v609
        %v626 = vmul.f32 %v514, %v610
        %v627 = vmul.f32 %v515, %v611
        %v628 = vmul.f32 %v516, %v612
        %v629 = vmul.f32 %v517, %v613
        %v630 = vmul.f32 %v518, %v614
        %v631 = vmul.f32 %v519, %v615
        %v632 = vmul.f32 %v520, %v616
        %v633 = vmul.f32 %v521, %v617
        %v634 = vmul.f32 %v522, %v618
        %v635 = vmul.f32 %v523, %v619
        %v636 = vmul.f32 %v524, %v620
        %v637 = vmul.f32 %v525, %v621
        %v638 = vmul.f32 %v526, %v622
        %v639 = vlaneseq
        %v640 = vshrl.u32 %v639, 7
        %v641 = vsub.s32 2, %v640
        %v642 = vrot.slane %v445, %v641
        %v643 = vmul.f32 %v623, %v642
        %v644 = vmul.f32 %v624, %v642
        %v645 = vmul.f32 %v625, %v642
        %v646 = vmul.f32 %v626, %v642
        %v647 = vmul.f32 %v627, %v642
        %v648 = vmul.f32 %v628, %v642
        %v649 = vmul.f32 %v629, %v642
        %v650 = vmul.f32 %v630, %v642
        %v651 = vmul.f32 %v631, %v642
        %v652 = vmul.f32 %v632, %v642
        %v653 = vmul.f32 %v633, %v642
        %v654 = vmul.f32 %v634, %v642
        %v655 = vmul.f32 %v635, %v642
        %v656 = vmul.f32 %v636, %v642
        %v657 = vmul.f32 %v637, %v642
        %v658 = vmul.f32 %v638, %v642
        %v659 = vlaneseq
        %v660 = vshrl.u32 %v659, 7
        %v661 = vsub.s32 3, %v660
        %v662 = vrot.slane %v445, %v661
        %v663 = vadd.f32 %v643, %v662
        %v664 = vadd.f32 %v644, %v662
        %v665 = vadd.f32 %v645, %v662
        %v666 = vadd.f32 %v646, %v662
        %v667 = vadd.f32 %v647, %v662
        %v668 = vadd.f32 %v648, %v662
        %v669 = vadd.f32 %v649, %v662
        %v670 = vadd.f32 %v650, %v662
        %v671 = vadd.f32 %v651, %v662
        %v672 = vadd.f32 %v652, %v662
        %v673 = vadd.f32 %v653, %v662
        %v674 = vadd.f32 %v654, %v662
        %v675 = vadd.f32 %v655, %v662
        %v676 = vadd.f32 %v656, %v662
        %v677 = vadd.f32 %v657, %v662
        %v678 = vadd.f32 %v658, %v662
        %vm695 = vcmask 1040384
        %v696 = vrot.slane %v663, 7
        %v697 = vrot.slane %v664, 7
        %v698 = vsel %vm695, %v696, %v697
        %v699 = vrot.slane %v665, 7
        %v700 = vrot.slane %v666, 7
        %v701 = vsel %vm695, %v699, %v700
        %v702 = vrot.slane %v667, 7
        %v703 = vrot.slane %v668, 7
        %v704 = vsel %vm695, %v702, %v703
        %v705 = vrot.slane %v669, 7
        %v706 = vrot.slane %v670, 7
        %v707 = vsel %vm695, %v705, %v706
        %v708 = vrot.slane %v671, 7
        %v709 = vrot.slane %v672, 7
        %v710 = vsel %vm695, %v708, %v709
        %v711 = vrot.slane %v673, 7
        %v712 = vrot.slane %v674, 7
        %v713 = vsel %vm695, %v711, %v712
        %v714 = vrot.slane %v675, 7
        %v715 = vrot.slane %v676, 7
        %v716 = vsel %vm695, %v714, %v715
        %v717 = vrot.slane %v677, 7
        %v718 = vrot.slane %v678, 7
        %v719 = vsel %vm695, %v717, %v718
        %v744 = vsel %vm695, 0.0, %v696
        %v745 = vsel %vm695, 0.0, %v699
        %v746 = vsel %vm695, 0.0, %v702
        %v747 = vsel %vm695, 0.0, %v705
        %v748 = vsel %vm695, 0.0, %v708
        %v749 = vsel %vm695, 0.0, %v711
        %v750 = vsel %vm695, 0.0, %v714
        %v751 = vsel %vm695, 0.0, %v717
        %v752 = vsel %vm695, %v697, 0.0
        %v753 = vsel %vm695, %v700, 0.0
        %v754 = vsel %vm695, %v703, 0.0
        %v755 = vsel %vm695, %v706, 0.0
        %v756 = vsel %vm695, %v709, 0.0
        %v757 = vsel %vm695, %v712, 0.0
        %v758 = vsel %vm695, %v715, 0.0
        %v759 = vsel %vm695, %v718, 0.0
        %s760 = scalar_lea.vmem [#allocation2], 24
        %761 = vst [vmem:[%s760] sm:$0xff] %v744
        %762 = vst [vmem:[%s760 + $0x8] sm:$0xff] %v698
        %763 = vst [vmem:[%s760 + $0x10] sm:$0x3] %v752
        %764 = vst [vmem:[%s760 + $0x18] sm:$0xff] %v745
        %765 = vst [vmem:[%s760 + $0x20] sm:$0xff] %v701
        %766 = vst [vmem:[%s760 + $0x28] sm:$0x3] %v753
        %767 = vst [vmem:[%s760 + $0x30] sm:$0xff] %v746
        %768 = vst [vmem:[%s760 + $0x38] sm:$0xff] %v704
        %769 = vst [vmem:[%s760 + $0x40] sm:$0x3] %v754
        %770 = vst [vmem:[%s760 + $0x48] sm:$0xff] %v747
        %771 = vst [vmem:[%s760 + $0x50] sm:$0xff] %v707
        %772 = vst [vmem:[%s760 + $0x58] sm:$0x3] %v755
        %773 = vst [vmem:[%s760 + $0x60] sm:$0xff] %v748
        %774 = vst [vmem:[%s760 + $0x68] sm:$0xff] %v710
        %775 = vst [vmem:[%s760 + $0x70] sm:$0x3] %v756
        %776 = vst [vmem:[%s760 + $0x78] sm:$0xff] %v749
        %777 = vst [vmem:[%s760 + $0x80] sm:$0xff] %v713
        %778 = vst [vmem:[%s760 + $0x88] sm:$0x3] %v757
        %779 = vst [vmem:[%s760 + $0x90] sm:$0xff] %v750
        %780 = vst [vmem:[%s760 + $0x98] sm:$0xff] %v716
        %781 = vst [vmem:[%s760 + $0xa0] sm:$0x3] %v758
        %782 = vst [vmem:[%s760 + $0xa8] sm:$0xff] %v751
        %783 = vst [vmem:[%s760 + $0xb0] sm:$0xff] %v719
        %784 = vst [vmem:[%s760 + $0xb8] sm:$0x3] %v759
        %v785 = vld [vmem:[%s378] sm:$0xff]
        %v786 = vld [vmem:[%s378 + $0x8] sm:$0xff]
        %787 = vadd.xlane.f32.xlu0 %v785
        %v788 = vpop.xlane.xlu0 %787
        %789 = vadd.xlane.f32.xlu0 %v786
        %v790 = vpop.xlane.xlu0 %789
        %v791 = vmul.f32 %v788, %v494
        %v792 = vmul.f32 %v790, %v494
        %v793 = vsub.f32 %v785, %v791
        %v794 = vsub.f32 %v786, %v792
        %v795 = vmul.f32 %v793, %v793
        %v796 = vmul.f32 %v794, %v794
        %797 = vadd.xlane.f32.xlu0 %v795
        %v798 = vpop.xlane.xlu0 %797
        %799 = vadd.xlane.f32.xlu0 %v796
        %v800 = vpop.xlane.xlu0 %799
        %v801 = vmul.f32 %v798, %v494
        %v802 = vmul.f32 %v800, %v494
        %v803 = vadd.f32 %v801, 1e-05
        %v804 = vadd.f32 %v802, 1e-05
        %v805 = vrsqrt.pop %v803
        %v806 = vrsqrt.pop %v804
        %v807 = vmul.f32 %v793, %v805
        %v808 = vmul.f32 %v794, %v806
        %v809 = vmul.f32 %v807, %v642
        %v810 = vmul.f32 %v808, %v642
        %v811 = vadd.f32 %v809, %v662
        %v812 = vadd.f32 %v810, %v662
        %p813 = scmp.gt.s32.totalorder %s33, 0
        %s814 = scalar_select %p813, 1, 0
        %v815 = vstv %s814
        %vm816 = vcmp.eq.s32.totalorder %v815, 1
        %v817 = vsel %vm816, %v811, 0.0
        %v818 = vsel %vm816, %v812, 0.0
        %v821 = vrot.slane %v817, 7
        %v822 = vrot.slane %v818, 7
        %v823 = vsel %vm695, %v821, %v822
        %v827 = vsel %vm695, 0.0, %v821
        %v828 = vsel %vm695, %v822, 0.0
        %829 = vst [vmem:[#allocation2] sm:$0xff] %v827
        %830 = vst [vmem:[#allocation2 + $0x8] sm:$0xff] %v823
        %831 = vst [vmem:[#allocation2 + $0x10] sm:$0x3] %v828
        %v832 = vld [vmem:[%s387] sm:$0xff]
        %v833 = vld [vmem:[%s387 + $0x8] sm:$0xff]
        %834 = vadd.xlane.f32.xlu0 %v832
        %v835 = vpop.xlane.xlu0 %834
        %836 = vadd.xlane.f32.xlu0 %v833
        %v837 = vpop.xlane.xlu0 %836
        %v838 = vmul.f32 %v835, %v494
        %v839 = vmul.f32 %v837, %v494
        %v840 = vsub.f32 %v832, %v838
        %v841 = vsub.f32 %v833, %v839
        %v842 = vmul.f32 %v840, %v840
        %v843 = vmul.f32 %v841, %v841
        %844 = vadd.xlane.f32.xlu0 %v842
        %v845 = vpop.xlane.xlu0 %844
        %846 = vadd.xlane.f32.xlu0 %v843
        %v847 = vpop.xlane.xlu0 %846
        %v848 = vmul.f32 %v845, %v494
        %v849 = vmul.f32 %v847, %v494
        %v850 = vadd.f32 %v848, 1e-05
        %v851 = vadd.f32 %v849, 1e-05
        %v852 = vrsqrt.pop %v850
        %v853 = vrsqrt.pop %v851
        %v854 = vmul.f32 %v840, %v852
        %v855 = vmul.f32 %v841, %v853
        %v856 = vmul.f32 %v854, %v642
        %v857 = vmul.f32 %v855, %v642
        %v858 = vadd.f32 %v856, %v662
        %v859 = vadd.f32 %v857, %v662
        %p860 = scmp.lt.s32.totalorder %s33, 1
        %s861 = scalar_select %p860, 1, 0
        %v862 = vstv %s861
        %vm863 = vcmp.eq.s32.totalorder %v862, 1
        %v864 = vsel %vm863, %v858, 0.0
        %v865 = vsel %vm863, %v859, 0.0
        %v868 = vrot.slane %v864, 7
        %v869 = vrot.slane %v865, 7
        %v870 = vsel %vm695, %v868, %v869
        %v874 = vsel %vm695, 0.0, %v868
        %v875 = vsel %vm695, %v869, 0.0
        %s876 = scalar_lea.vmem [#allocation2], 216
        %877 = vst [vmem:[%s876] sm:$0xff] %v874
        %878 = vst [vmem:[%s876 + $0x8] sm:$0xff] %v870
        %879 = vst [vmem:[%s876 + $0x10] sm:$0x3] %v875
        %v880 = vld [vmem:[#allocation2] sm:$0xff]
        %v881 = vld [vmem:[#allocation2 + $0x8] sm:$0xff]
        %v882 = vld [vmem:[#allocation2 + $0x18] sm:$0xff]
        %v883 = vld [vmem:[#allocation2 + $0x20] sm:$0xff]
        %v884 = vld [vmem:[#allocation2 + $0x30] sm:$0xff]
        %v885 = vld [vmem:[#allocation2 + $0x38] sm:$0xff]
        %v886 = vld [vmem:[#allocation2 + $0x48] sm:$0xff]
        %v887 = vld [vmem:[#allocation2 + $0x50] sm:$0xff]
        %v888 = vld [vmem:[#allocation2 + $0x60] sm:$0xff]
        %v889 = vld [vmem:[#allocation2 + $0x68] sm:$0xff]
        %v890 = vld [vmem:[#allocation2 + $0x78] sm:$0xff]
        %v891 = vld [vmem:[#allocation2 + $0x80] sm:$0xff]
        %v892 = vld [vmem:[#allocation2 + $0x90] sm:$0xff]
        %v893 = vld [vmem:[#allocation2 + $0x98] sm:$0xff]
        %v894 = vld [vmem:[#allocation2 + $0xa8] sm:$0xff]
        %v895 = vld [vmem:[#allocation2 + $0xb0] sm:$0xff]
        %v896 = vlaneseq
        %v897 = vshrl.u32 %v896, 7
        %v898 = vsub.s32 0, %v897
        %v899 = vrot.slane %v444, %v898
        %v900 = vmul.f32 %v880, %v899
        %v901 = vmul.f32 %v881, %v899
        %v902 = vmul.f32 %v882, %v899
        %v903 = vmul.f32 %v883, %v899
        %v904 = vmul.f32 %v884, %v899
        %v905 = vmul.f32 %v885, %v899
        %v906 = vmul.f32 %v886, %v899
        %v907 = vmul.f32 %v887, %v899
        %v908 = vmul.f32 %v888, %v899
        %v909 = vmul.f32 %v889, %v899
        %v910 = vmul.f32 %v890, %v899
        %v911 = vmul.f32 %v891, %v899
        %v912 = vmul.f32 %v892, %v899
        %v913 = vmul.f32 %v893, %v899
        %v914 = vmul.f32 %v894, %v899
        %v915 = vmul.f32 %v895, %v899
        %v916 = vlaneseq
        %v917 = vshrl.u32 %v916, 7
        %v918 = vsub.s32 1, %v917
        %v919 = vrot.slane %v445, %v918
        %v920 = vadd.f32 %v900, %v919
        %v921 = vadd.f32 %v901, %v919
        %v922 = vadd.f32 %v902, %v919
        %v923 = vadd.f32 %v903, %v919
        %v924 = vadd.f32 %v904, %v919
        %v925 = vadd.f32 %v905, %v919
        %v926 = vadd.f32 %v906, %v919
        %v927 = vadd.f32 %v907, %v919
        %v928 = vadd.f32 %v908, %v919
        %v929 = vadd.f32 %v909, %v919
        %v930 = vadd.f32 %v910, %v919
        %v931 = vadd.f32 %v911, %v919
        %v932 = vadd.f32 %v912, %v919
        %v933 = vadd.f32 %v913, %v919
        %v934 = vadd.f32 %v914, %v919
        %v935 = vadd.f32 %v915, %v919
        %v936 = vld [vmem:[#allocation2 + $0x1] sm:$0xff]
        %v937 = vld [vmem:[#allocation2 + $0x9] sm:$0xff]
        %v938 = vld [vmem:[#allocation2 + $0x19] sm:$0xff]
        %v939 = vld [vmem:[#allocation2 + $0x21] sm:$0xff]
        %v940 = vld [vmem:[#allocation2 + $0x31] sm:$0xff]
        %v941 = vld [vmem:[#allocation2 + $0x39] sm:$0xff]
        %v942 = vld [vmem:[#allocation2 + $0x49] sm:$0xff]
        %v943 = vld [vmem:[#allocation2 + $0x51] sm:$0xff]
        %v944 = vld [vmem:[#allocation2 + $0x61] sm:$0xff]
        %v945 = vld [vmem:[#allocation2 + $0x69] sm:$0xff]
        %v946 = vld [vmem:[#allocation2 + $0x79] sm:$0xff]
        %v947 = vld [vmem:[#allocation2 + $0x81] sm:$0xff]
        %v948 = vld [vmem:[#allocation2 + $0x91] sm:$0xff]
        %v949 = vld [vmem:[#allocation2 + $0x99] sm:$0xff]
        %v950 = vld [vmem:[#allocation2 + $0xa9] sm:$0xff]
        %v951 = vld [vmem:[#allocation2 + $0xb1] sm:$0xff]
        %v952 = vlaneseq
        %v953 = vshrl.u32 %v952, 7
        %v954 = vsub.s32 1, %v953
        %v955 = vrot.slane %v444, %v954
        %v956 = vmul.f32 %v936, %v955
        %v957 = vmul.f32 %v937, %v955
        %v958 = vmul.f32 %v938, %v955
        %v959 = vmul.f32 %v939, %v955
        %v960 = vmul.f32 %v940, %v955
        %v961 = vmul.f32 %v941, %v955
        %v962 = vmul.f32 %v942, %v955
        %v963 = vmul.f32 %v943, %v955
        %v964 = vmul.f32 %v944, %v955
        %v965 = vmul.f32 %v945, %v955
        %v966 = vmul.f32 %v946, %v955
        %v967 = vmul.f32 %v947, %v955
        %v968 = vmul.f32 %v948, %v955
        %v969 = vmul.f32 %v949, %v955
        %v970 = vmul.f32 %v950, %v955
        %v971 = vmul.f32 %v951, %v955
        %v972 = vadd.f32 %v920, %v956
        %v973 = vadd.f32 %v921, %v957
        %v974 = vadd.f32 %v922, %v958
        %v975 = vadd.f32 %v923, %v959
        %v976 = vadd.f32 %v924, %v960
        %v977 = vadd.f32 %v925, %v961
        %v978 = vadd.f32 %v926, %v962
        %v979 = vadd.f32 %v927, %v963
        %v980 = vadd.f32 %v928, %v964
        %v981 = vadd.f32 %v929, %v965
        %v982 = vadd.f32 %v930, %v966
        %v983 = vadd.f32 %v931, %v967
        %v984 = vadd.f32 %v932, %v968
        %v985 = vadd.f32 %v933, %v969
        %v986 = vadd.f32 %v934, %v970
        %v987 = vadd.f32 %v935, %v971
        %v988 = vld [vmem:[#allocation2 + $0x2] sm:$0xff]
        %v989 = vld [vmem:[#allocation2 + $0xa] sm:$0xff]
        %v990 = vld [vmem:[#allocation2 + $0x1a] sm:$0xff]
        %v991 = vld [vmem:[#allocation2 + $0x22] sm:$0xff]
        %v992 = vld [vmem:[#allocation2 + $0x32] sm:$0xff]
        %v993 = vld [vmem:[#allocation2 + $0x3a] sm:$0xff]
        %v994 = vld [vmem:[#allocation2 + $0x4a] sm:$0xff]
        %v995 = vld [vmem:[#allocation2 + $0x52] sm:$0xff]
        %v996 = vld [vmem:[#allocation2 + $0x62] sm:$0xff]
        %v997 = vld [vmem:[#allocation2 + $0x6a] sm:$0xff]
        %v998 = vld [vmem:[#allocation2 + $0x7a] sm:$0xff]
        %v999 = vld [vmem:[#allocation2 + $0x82] sm:$0xff]
        %v1000 = vld [vmem:[#allocation2 + $0x92] sm:$0xff]
        %v1001 = vld [vmem:[#allocation2 + $0x9a] sm:$0xff]
        %v1002 = vld [vmem:[#allocation2 + $0xaa] sm:$0xff]
        %v1003 = vld [vmem:[#allocation2 + $0xb2] sm:$0xff]
        %v1004 = vlaneseq
        %v1005 = vshrl.u32 %v1004, 7
        %v1006 = vsub.s32 2, %v1005
        %v1007 = vrot.slane %v444, %v1006
        %v1008 = vmul.f32 %v988, %v1007
        %v1009 = vmul.f32 %v989, %v1007
        %v1010 = vmul.f32 %v990, %v1007
        %v1011 = vmul.f32 %v991, %v1007
        %v1012 = vmul.f32 %v992, %v1007
        %v1013 = vmul.f32 %v993, %v1007
        %v1014 = vmul.f32 %v994, %v1007
        %v1015 = vmul.f32 %v995, %v1007
        %v1016 = vmul.f32 %v996, %v1007
        %v1017 = vmul.f32 %v997, %v1007
        %v1018 = vmul.f32 %v998, %v1007
        %v1019 = vmul.f32 %v999, %v1007
        %v1020 = vmul.f32 %v1000, %v1007
        %v1021 = vmul.f32 %v1001, %v1007
        %v1022 = vmul.f32 %v1002, %v1007
        %v1023 = vmul.f32 %v1003, %v1007
        %v1024 = vadd.f32 %v972, %v1008
        %v1025 = vadd.f32 %v973, %v1009
        %v1026 = vadd.f32 %v974, %v1010
        %v1027 = vadd.f32 %v975, %v1011
        %v1028 = vadd.f32 %v976, %v1012
        %v1029 = vadd.f32 %v977, %v1013
        %v1030 = vadd.f32 %v978, %v1014
        %v1031 = vadd.f32 %v979, %v1015
        %v1032 = vadd.f32 %v980, %v1016
        %v1033 = vadd.f32 %v981, %v1017
        %v1034 = vadd.f32 %v982, %v1018
        %v1035 = vadd.f32 %v983, %v1019
        %v1036 = vadd.f32 %v984, %v1020
        %v1037 = vadd.f32 %v985, %v1021
        %v1038 = vadd.f32 %v986, %v1022
        %v1039 = vadd.f32 %v987, %v1023
        %v1040 = vld [vmem:[%s760] sm:$0xff]
        %v1041 = vld [vmem:[%s760 + $0x8] sm:$0xff]
        %v1042 = vld [vmem:[%s760 + $0x18] sm:$0xff]
        %v1043 = vld [vmem:[%s760 + $0x20] sm:$0xff]
        %v1044 = vld [vmem:[%s760 + $0x30] sm:$0xff]
        %v1045 = vld [vmem:[%s760 + $0x38] sm:$0xff]
        %v1046 = vld [vmem:[%s760 + $0x48] sm:$0xff]
        %v1047 = vld [vmem:[%s760 + $0x50] sm:$0xff]
        %v1048 = vld [vmem:[%s760 + $0x60] sm:$0xff]
        %v1049 = vld [vmem:[%s760 + $0x68] sm:$0xff]
        %v1050 = vld [vmem:[%s760 + $0x78] sm:$0xff]
        %v1051 = vld [vmem:[%s760 + $0x80] sm:$0xff]
        %v1052 = vld [vmem:[%s760 + $0x90] sm:$0xff]
        %v1053 = vld [vmem:[%s760 + $0x98] sm:$0xff]
        %v1054 = vld [vmem:[%s760 + $0xa8] sm:$0xff]
        %v1055 = vld [vmem:[%s760 + $0xb0] sm:$0xff]
        %v1056 = vlaneseq
        %v1057 = vshrl.u32 %v1056, 7
        %v1058 = vsub.s32 3, %v1057
        %v1059 = vrot.slane %v444, %v1058
        %v1060 = vmul.f32 %v1040, %v1059
        %v1061 = vmul.f32 %v1041, %v1059
        %v1062 = vmul.f32 %v1042, %v1059
        %v1063 = vmul.f32 %v1043, %v1059
        %v1064 = vmul.f32 %v1044, %v1059
        %v1065 = vmul.f32 %v1045, %v1059
        %v1066 = vmul.f32 %v1046, %v1059
        %v1067 = vmul.f32 %v1047, %v1059
        %v1068 = vmul.f32 %v1048, %v1059
        %v1069 = vmul.f32 %v1049, %v1059
        %v1070 = vmul.f32 %v1050, %v1059
        %v1071 = vmul.f32 %v1051, %v1059
        %v1072 = vmul.f32 %v1052, %v1059
        %v1073 = vmul.f32 %v1053, %v1059
        %v1074 = vmul.f32 %v1054, %v1059
        %v1075 = vmul.f32 %v1055, %v1059
        %v1076 = vadd.f32 %v1024, %v1060
        %v1077 = vadd.f32 %v1025, %v1061
        %v1078 = vadd.f32 %v1026, %v1062
        %v1079 = vadd.f32 %v1027, %v1063
        %v1080 = vadd.f32 %v1028, %v1064
        %v1081 = vadd.f32 %v1029, %v1065
        %v1082 = vadd.f32 %v1030, %v1066
        %v1083 = vadd.f32 %v1031, %v1067
        %v1084 = vadd.f32 %v1032, %v1068
        %v1085 = vadd.f32 %v1033, %v1069
        %v1086 = vadd.f32 %v1034, %v1070
        %v1087 = vadd.f32 %v1035, %v1071
        %v1088 = vadd.f32 %v1036, %v1072
        %v1089 = vadd.f32 %v1037, %v1073
        %v1090 = vadd.f32 %v1038, %v1074
        %v1091 = vadd.f32 %v1039, %v1075
        %v1092 = vld [vmem:[%s760 + $0x1] sm:$0xff]
        %v1093 = vld [vmem:[%s760 + $0x9] sm:$0xff]
        %v1094 = vld [vmem:[%s760 + $0x19] sm:$0xff]
        %v1095 = vld [vmem:[%s760 + $0x21] sm:$0xff]
        %v1096 = vld [vmem:[%s760 + $0x31] sm:$0xff]
        %v1097 = vld [vmem:[%s760 + $0x39] sm:$0xff]
        %v1098 = vld [vmem:[%s760 + $0x49] sm:$0xff]
        %v1099 = vld [vmem:[%s760 + $0x51] sm:$0xff]
        %v1100 = vld [vmem:[%s760 + $0x61] sm:$0xff]
        %v1101 = vld [vmem:[%s760 + $0x69] sm:$0xff]
        %v1102 = vld [vmem:[%s760 + $0x79] sm:$0xff]
        %v1103 = vld [vmem:[%s760 + $0x81] sm:$0xff]
        %v1104 = vld [vmem:[%s760 + $0x91] sm:$0xff]
        %v1105 = vld [vmem:[%s760 + $0x99] sm:$0xff]
        %v1106 = vld [vmem:[%s760 + $0xa9] sm:$0xff]
        %v1107 = vld [vmem:[%s760 + $0xb1] sm:$0xff]
        %v1108 = vlaneseq
        %v1109 = vshrl.u32 %v1108, 7
        %v1110 = vsub.s32 4, %v1109
        %v1111 = vrot.slane %v444, %v1110
        %v1112 = vmul.f32 %v1092, %v1111
        %v1113 = vmul.f32 %v1093, %v1111
        %v1114 = vmul.f32 %v1094, %v1111
        %v1115 = vmul.f32 %v1095, %v1111
        %v1116 = vmul.f32 %v1096, %v1111
        %v1117 = vmul.f32 %v1097, %v1111
        %v1118 = vmul.f32 %v1098, %v1111
        %v1119 = vmul.f32 %v1099, %v1111
        %v1120 = vmul.f32 %v1100, %v1111
        %v1121 = vmul.f32 %v1101, %v1111
        %v1122 = vmul.f32 %v1102, %v1111
        %v1123 = vmul.f32 %v1103, %v1111
        %v1124 = vmul.f32 %v1104, %v1111
        %v1125 = vmul.f32 %v1105, %v1111
        %v1126 = vmul.f32 %v1106, %v1111
        %v1127 = vmul.f32 %v1107, %v1111
        %v1128 = vadd.f32 %v1076, %v1112
        %v1129 = vadd.f32 %v1077, %v1113
        %v1130 = vadd.f32 %v1078, %v1114
        %v1131 = vadd.f32 %v1079, %v1115
        %v1132 = vadd.f32 %v1080, %v1116
        %v1133 = vadd.f32 %v1081, %v1117
        %v1134 = vadd.f32 %v1082, %v1118
        %v1135 = vadd.f32 %v1083, %v1119
        %v1136 = vadd.f32 %v1084, %v1120
        %v1137 = vadd.f32 %v1085, %v1121
        %v1138 = vadd.f32 %v1086, %v1122
        %v1139 = vadd.f32 %v1087, %v1123
        %v1140 = vadd.f32 %v1088, %v1124
        %v1141 = vadd.f32 %v1089, %v1125
        %v1142 = vadd.f32 %v1090, %v1126
        %v1143 = vadd.f32 %v1091, %v1127
        %v1144 = vld [vmem:[%s760 + $0x2] sm:$0xff]
        %v1145 = vld [vmem:[%s760 + $0xa] sm:$0xff]
        %v1146 = vld [vmem:[%s760 + $0x1a] sm:$0xff]
        %v1147 = vld [vmem:[%s760 + $0x22] sm:$0xff]
        %v1148 = vld [vmem:[%s760 + $0x32] sm:$0xff]
        %v1149 = vld [vmem:[%s760 + $0x3a] sm:$0xff]
        %v1150 = vld [vmem:[%s760 + $0x4a] sm:$0xff]
        %v1151 = vld [vmem:[%s760 + $0x52] sm:$0xff]
        %v1152 = vld [vmem:[%s760 + $0x62] sm:$0xff]
        %v1153 = vld [vmem:[%s760 + $0x6a] sm:$0xff]
        %v1154 = vld [vmem:[%s760 + $0x7a] sm:$0xff]
        %v1155 = vld [vmem:[%s760 + $0x82] sm:$0xff]
        %v1156 = vld [vmem:[%s760 + $0x92] sm:$0xff]
        %v1157 = vld [vmem:[%s760 + $0x9a] sm:$0xff]
        %v1158 = vld [vmem:[%s760 + $0xaa] sm:$0xff]
        %v1159 = vld [vmem:[%s760 + $0xb2] sm:$0xff]
        %v1160 = vlaneseq
        %v1161 = vshrl.u32 %v1160, 7
        %v1162 = vsub.s32 5, %v1161
        %v1163 = vrot.slane %v444, %v1162
        %v1164 = vmul.f32 %v1144, %v1163
        %v1165 = vmul.f32 %v1145, %v1163
        %v1166 = vmul.f32 %v1146, %v1163
        %v1167 = vmul.f32 %v1147, %v1163
        %v1168 = vmul.f32 %v1148, %v1163
        %v1169 = vmul.f32 %v1149, %v1163
        %v1170 = vmul.f32 %v1150, %v1163
        %v1171 = vmul.f32 %v1151, %v1163
        %v1172 = vmul.f32 %v1152, %v1163
        %v1173 = vmul.f32 %v1153, %v1163
        %v1174 = vmul.f32 %v1154, %v1163
        %v1175 = vmul.f32 %v1155, %v1163
        %v1176 = vmul.f32 %v1156, %v1163
        %v1177 = vmul.f32 %v1157, %v1163
        %v1178 = vmul.f32 %v1158, %v1163
        %v1179 = vmul.f32 %v1159, %v1163
        %v1180 = vadd.f32 %v1128, %v1164
        %v1181 = vadd.f32 %v1129, %v1165
        %v1182 = vadd.f32 %v1130, %v1166
        %v1183 = vadd.f32 %v1131, %v1167
        %v1184 = vadd.f32 %v1132, %v1168
        %v1185 = vadd.f32 %v1133, %v1169
        %v1186 = vadd.f32 %v1134, %v1170
        %v1187 = vadd.f32 %v1135, %v1171
        %v1188 = vadd.f32 %v1136, %v1172
        %v1189 = vadd.f32 %v1137, %v1173
        %v1190 = vadd.f32 %v1138, %v1174
        %v1191 = vadd.f32 %v1139, %v1175
        %v1192 = vadd.f32 %v1140, %v1176
        %v1193 = vadd.f32 %v1141, %v1177
        %v1194 = vadd.f32 %v1142, %v1178
        %v1195 = vadd.f32 %v1143, %v1179
        %s1196 = scalar_lea.vmem [#allocation2], 48
        %v1197 = vld [vmem:[%s1196] sm:$0xff]
        %v1198 = vld [vmem:[%s1196 + $0x8] sm:$0xff]
        %v1199 = vld [vmem:[%s1196 + $0x18] sm:$0xff]
        %v1200 = vld [vmem:[%s1196 + $0x20] sm:$0xff]
        %v1201 = vld [vmem:[%s1196 + $0x30] sm:$0xff]
        %v1202 = vld [vmem:[%s1196 + $0x38] sm:$0xff]
        %v1203 = vld [vmem:[%s1196 + $0x48] sm:$0xff]
        %v1204 = vld [vmem:[%s1196 + $0x50] sm:$0xff]
        %v1205 = vld [vmem:[%s1196 + $0x60] sm:$0xff]
        %v1206 = vld [vmem:[%s1196 + $0x68] sm:$0xff]
        %v1207 = vld [vmem:[%s1196 + $0x78] sm:$0xff]
        %v1208 = vld [vmem:[%s1196 + $0x80] sm:$0xff]
        %v1209 = vld [vmem:[%s1196 + $0x90] sm:$0xff]
        %v1210 = vld [vmem:[%s1196 + $0x98] sm:$0xff]
        %v1211 = vld [vmem:[%s1196 + $0xa8] sm:$0xff]
        %v1212 = vld [vmem:[%s1196 + $0xb0] sm:$0xff]
        %v1213 = vlaneseq
        %v1214 = vshrl.u32 %v1213, 7
        %v1215 = vsub.s32 6, %v1214
        %v1216 = vrot.slane %v444, %v1215
        %v1217 = vmul.f32 %v1197, %v1216
        %v1218 = vmul.f32 %v1198, %v1216
        %v1219 = vmul.f32 %v1199, %v1216
        %v1220 = vmul.f32 %v1200, %v1216
        %v1221 = vmul.f32 %v1201, %v1216
        %v1222 = vmul.f32 %v1202, %v1216
        %v1223 = vmul.f32 %v1203, %v1216
        %v1224 = vmul.f32 %v1204, %v1216
        %v1225 = vmul.f32 %v1205, %v1216
        %v1226 = vmul.f32 %v1206, %v1216
        %v1227 = vmul.f32 %v1207, %v1216
        %v1228 = vmul.f32 %v1208, %v1216
        %v1229 = vmul.f32 %v1209, %v1216
        %v1230 = vmul.f32 %v1210, %v1216
        %v1231 = vmul.f32 %v1211, %v1216
        %v1232 = vmul.f32 %v1212, %v1216
        %v1233 = vadd.f32 %v1180, %v1217
        %v1234 = vadd.f32 %v1181, %v1218
        %v1235 = vadd.f32 %v1182, %v1219
        %v1236 = vadd.f32 %v1183, %v1220
        %v1237 = vadd.f32 %v1184, %v1221
        %v1238 = vadd.f32 %v1185, %v1222
        %v1239 = vadd.f32 %v1186, %v1223
        %v1240 = vadd.f32 %v1187, %v1224
        %v1241 = vadd.f32 %v1188, %v1225
        %v1242 = vadd.f32 %v1189, %v1226
        %v1243 = vadd.f32 %v1190, %v1227
        %v1244 = vadd.f32 %v1191, %v1228
        %v1245 = vadd.f32 %v1192, %v1229
        %v1246 = vadd.f32 %v1193, %v1230
        %v1247 = vadd.f32 %v1194, %v1231
        %v1248 = vadd.f32 %v1195, %v1232
        %v1249 = vld [vmem:[%s1196 + $0x1] sm:$0xff]
        %v1250 = vld [vmem:[%s1196 + $0x9] sm:$0xff]
        %v1251 = vld [vmem:[%s1196 + $0x19] sm:$0xff]
        %v1252 = vld [vmem:[%s1196 + $0x21] sm:$0xff]
        %v1253 = vld [vmem:[%s1196 + $0x31] sm:$0xff]
        %v1254 = vld [vmem:[%s1196 + $0x39] sm:$0xff]
        %v1255 = vld [vmem:[%s1196 + $0x49] sm:$0xff]
        %v1256 = vld [vmem:[%s1196 + $0x51] sm:$0xff]
        %v1257 = vld [vmem:[%s1196 + $0x61] sm:$0xff]
        %v1258 = vld [vmem:[%s1196 + $0x69] sm:$0xff]
        %v1259 = vld [vmem:[%s1196 + $0x79] sm:$0xff]
        %v1260 = vld [vmem:[%s1196 + $0x81] sm:$0xff]
        %v1261 = vld [vmem:[%s1196 + $0x91] sm:$0xff]
        %v1262 = vld [vmem:[%s1196 + $0x99] sm:$0xff]
        %v1263 = vld [vmem:[%s1196 + $0xa9] sm:$0xff]
        %v1264 = vld [vmem:[%s1196 + $0xb1] sm:$0xff]
        %v1265 = vlaneseq
        %v1266 = vshrl.u32 %v1265, 7
        %v1267 = vsub.s32 7, %v1266
        %v1268 = vrot.slane %v444, %v1267
        %v1269 = vmul.f32 %v1249, %v1268
        %v1270 = vmul.f32 %v1250, %v1268
        %v1271 = vmul.f32 %v1251, %v1268
        %v1272 = vmul.f32 %v1252, %v1268
        %v1273 = vmul.f32 %v1253, %v1268
        %v1274 = vmul.f32 %v1254, %v1268
        %v1275 = vmul.f32 %v1255, %v1268
        %v1276 = vmul.f32 %v1256, %v1268
        %v1277 = vmul.f32 %v1257, %v1268
        %v1278 = vmul.f32 %v1258, %v1268
        %v1279 = vmul.f32 %v1259, %v1268
        %v1280 = vmul.f32 %v1260, %v1268
        %v1281 = vmul.f32 %v1261, %v1268
        %v1282 = vmul.f32 %v1262, %v1268
        %v1283 = vmul.f32 %v1263, %v1268
        %v1284 = vmul.f32 %v1264, %v1268
        %v1285 = vadd.f32 %v1233, %v1269
        %v1286 = vadd.f32 %v1234, %v1270
        %v1287 = vadd.f32 %v1235, %v1271
        %v1288 = vadd.f32 %v1236, %v1272
        %v1289 = vadd.f32 %v1237, %v1273
        %v1290 = vadd.f32 %v1238, %v1274
        %v1291 = vadd.f32 %v1239, %v1275
        %v1292 = vadd.f32 %v1240, %v1276
        %v1293 = vadd.f32 %v1241, %v1277
        %v1294 = vadd.f32 %v1242, %v1278
        %v1295 = vadd.f32 %v1243, %v1279
        %v1296 = vadd.f32 %v1244, %v1280
        %v1297 = vadd.f32 %v1245, %v1281
        %v1298 = vadd.f32 %v1246, %v1282
        %v1299 = vadd.f32 %v1247, %v1283
        %v1300 = vadd.f32 %v1248, %v1284
        %v1301 = vld [vmem:[%s1196 + $0x2] sm:$0xff]
        %v1302 = vld [vmem:[%s1196 + $0xa] sm:$0xff]
        %v1303 = vld [vmem:[%s1196 + $0x1a] sm:$0xff]
        %v1304 = vld [vmem:[%s1196 + $0x22] sm:$0xff]
        %v1305 = vld [vmem:[%s1196 + $0x32] sm:$0xff]
        %v1306 = vld [vmem:[%s1196 + $0x3a] sm:$0xff]
        %v1307 = vld [vmem:[%s1196 + $0x4a] sm:$0xff]
        %v1308 = vld [vmem:[%s1196 + $0x52] sm:$0xff]
        %v1309 = vld [vmem:[%s1196 + $0x62] sm:$0xff]
        %v1310 = vld [vmem:[%s1196 + $0x6a] sm:$0xff]
        %v1311 = vld [vmem:[%s1196 + $0x7a] sm:$0xff]
        %v1312 = vld [vmem:[%s1196 + $0x82] sm:$0xff]
        %v1313 = vld [vmem:[%s1196 + $0x92] sm:$0xff]
        %v1314 = vld [vmem:[%s1196 + $0x9a] sm:$0xff]
        %v1315 = vld [vmem:[%s1196 + $0xaa] sm:$0xff]
        %v1316 = vld [vmem:[%s1196 + $0xb2] sm:$0xff]
        %v1317 = vlaneseq
        %v1318 = vshrl.u32 %v1317, 7
        %v1319 = vsub.s32 0, %v1318
        %v1320 = vrot.slane %v445, %v1319
        %v1321 = vmul.f32 %v1301, %v1320
        %v1322 = vmul.f32 %v1302, %v1320
        %v1323 = vmul.f32 %v1303, %v1320
        %v1324 = vmul.f32 %v1304, %v1320
        %v1325 = vmul.f32 %v1305, %v1320
        %v1326 = vmul.f32 %v1306, %v1320
        %v1327 = vmul.f32 %v1307, %v1320
        %v1328 = vmul.f32 %v1308, %v1320
        %v1329 = vmul.f32 %v1309, %v1320
        %v1330 = vmul.f32 %v1310, %v1320
        %v1331 = vmul.f32 %v1311, %v1320
        %v1332 = vmul.f32 %v1312, %v1320
        %v1333 = vmul.f32 %v1313, %v1320
        %v1334 = vmul.f32 %v1314, %v1320
        %v1335 = vmul.f32 %v1315, %v1320
        %v1336 = vmul.f32 %v1316, %v1320
        %v1337 = vadd.f32 %v1285, %v1321
        %v1338 = vadd.f32 %v1286, %v1322
        %v1339 = vadd.f32 %v1287, %v1323
        %v1340 = vadd.f32 %v1288, %v1324
        %v1341 = vadd.f32 %v1289, %v1325
        %v1342 = vadd.f32 %v1290, %v1326
        %v1343 = vadd.f32 %v1291, %v1327
        %v1344 = vadd.f32 %v1292, %v1328
        %v1345 = vadd.f32 %v1293, %v1329
        %v1346 = vadd.f32 %v1294, %v1330
        %v1347 = vadd.f32 %v1295, %v1331
        %v1348 = vadd.f32 %v1296, %v1332
        %v1349 = vadd.f32 %v1297, %v1333
        %v1350 = vadd.f32 %v1298, %v1334
        %v1351 = vadd.f32 %v1299, %v1335
        %v1352 = vadd.f32 %v1300, %v1336
        %v1353 = vld [vmem:[%s360] sm:$0xff]
        %v1354 = vld [vmem:[%s360 + $0x8] sm:$0xff]
        %v1355 = vld [vmem:[%s360 + $0x10] sm:$0xff]
        %v1356 = vld [vmem:[%s360 + $0x18] sm:$0xff]
        %v1357 = vld [vmem:[%s360 + $0x20] sm:$0xff]
        %v1358 = vld [vmem:[%s360 + $0x28] sm:$0xff]
        %v1359 = vld [vmem:[%s360 + $0x30] sm:$0xff]
        %v1360 = vld [vmem:[%s360 + $0x38] sm:$0xff]
        %v1361 = vld [vmem:[%s360 + $0x40] sm:$0xff]
        %v1362 = vld [vmem:[%s360 + $0x48] sm:$0xff]
        %v1363 = vld [vmem:[%s360 + $0x50] sm:$0xff]
        %v1364 = vld [vmem:[%s360 + $0x58] sm:$0xff]
        %v1365 = vld [vmem:[%s360 + $0x60] sm:$0xff]
        %v1366 = vld [vmem:[%s360 + $0x68] sm:$0xff]
        %v1367 = vld [vmem:[%s360 + $0x70] sm:$0xff]
        %v1368 = vld [vmem:[%s360 + $0x78] sm:$0xff]
        %v1369 = vmul.f32 %v1353, %v1337
        %v1370 = vmul.f32 %v1354, %v1338
        %v1371 = vmul.f32 %v1355, %v1339
        %v1372 = vmul.f32 %v1356, %v1340
        %v1373 = vmul.f32 %v1357, %v1341
        %v1374 = vmul.f32 %v1358, %v1342
        %v1375 = vmul.f32 %v1359, %v1343
        %v1376 = vmul.f32 %v1360, %v1344
        %v1377 = vmul.f32 %v1361, %v1345
        %v1378 = vmul.f32 %v1362, %v1346
        %v1379 = vmul.f32 %v1363, %v1347
        %v1380 = vmul.f32 %v1364, %v1348
        %v1381 = vmul.f32 %v1365, %v1349
        %v1382 = vmul.f32 %v1366, %v1350
        %v1383 = vmul.f32 %v1367, %v1351
        %v1384 = vmul.f32 %v1368, %v1352
        %1385 = vst [vmem:[%s432] sm:$0xff] %v1369
        %1386 = vst [vmem:[%s432 + $0x8] sm:$0xff] %v1370
        %1387 = vst [vmem:[%s432 + $0x10] sm:$0xff] %v1371
        %1388 = vst [vmem:[%s432 + $0x18] sm:$0xff] %v1372
        %1389 = vst [vmem:[%s432 + $0x20] sm:$0xff] %v1373
        %1390 = vst [vmem:[%s432 + $0x28] sm:$0xff] %v1374
        %1391 = vst [vmem:[%s432 + $0x30] sm:$0xff] %v1375
        %1392 = vst [vmem:[%s432 + $0x38] sm:$0xff] %v1376
        %1393 = vst [vmem:[%s432 + $0x40] sm:$0xff] %v1377
        %1394 = vst [vmem:[%s432 + $0x48] sm:$0xff] %v1378
        %1395 = vst [vmem:[%s432 + $0x50] sm:$0xff] %v1379
        %1396 = vst [vmem:[%s432 + $0x58] sm:$0xff] %v1380
        %1397 = vst [vmem:[%s432 + $0x60] sm:$0xff] %v1381
        %1398 = vst [vmem:[%s432 + $0x68] sm:$0xff] %v1382
        %1399 = vst [vmem:[%s432 + $0x70] sm:$0xff] %v1383
        %1400 = vst [vmem:[%s432 + $0x78] sm:$0xff] %v1384
        %s1401 = sand.u32 %s199, 1
        %s1402 = scalar_lea.sflag [#allocation5], %s1401
        %s1403 = sand.u32 %s199, 1
        %s1404 = smul.addr %s1403, 128
        %s1405 = scalar_lea.vmem [#allocation12], %s1404
        // Predicated region
        $region61: #{tpu_custom_call.1} parent=39 // pred_check
          %p1406 = pneg %p209
        $region62: #{tpu_custom_call.1} parent=39 // pred_check_branch
          %1408 = sbr.rel (%p1406) target = $region64
        $region63: #{tpu_custom_call.1} parent=39 // pred_region
          %s1409 = smul.u32 8, %s33
          %s1411 = ssub.s32 2048, 2048
          %1412 = vsyncadd %s1402, %s1411
          %s1413 = smul.addr %s1409, 2
          %s1414 = smul.addr %s32, 32
          %s1415 = sadd.s32 %s1413, %s1414
          %s1416 = smul.addr %s1415, 128
          %s1417 = scalar_lea.hbm %s5, %s1416
          %s1418 = sshll.u32 %s1405, 4
          %s1419 = int_to_ptr.vmem [resolvable:$true] %s1418
          %1424 = dma.vmem_to_hbm [thread:$0]  %s1419, 2048, %s1417, %s1402, 128, 128, 8
        $region64: #{tpu_custom_call.1} parent=39 // pred_fallthru
          _
      $region40: #{tpu_custom_call.1} parent=5 // pred_fallthru
        _
      %p1425 = scmp.le.s32.totalorder 2, %s23
      // Predicated region
      $region65: #{tpu_custom_call.1} parent=5 // pred_check
        %p1426 = pneg %p1425
      $region66: #{tpu_custom_call.1} parent=5 // pred_check_branch
        %1428 = sbr.rel (%p1426) target = $region68
      $region67: #{tpu_custom_call.1} parent=5 // pred_region
        %s1429 = ssub.s32 %s23, 2
        // Predicated region
        $region69: #{tpu_custom_call.1} parent=67 // pred_check
          %p1430 = pneg %p215
        $region70: #{tpu_custom_call.1} parent=67 // pred_check_branch
          %1432 = sbr.rel (%p1430) target = $region72
        $region71: #{tpu_custom_call.1} parent=67 // pred_region
          %s1433 = sand.u32 %s200, 1
          %s1434 = scalar_lea.sflag [#allocation5], %s1433
          %s1435 = sand.u32 %s200, 1
          %s1436 = smul.addr %s1435, 128
          %s1437 = scalar_lea.vmem [#allocation12], %s1436
          %1438 = dma.done %s1434, 2048
        $region72: #{tpu_custom_call.1} parent=67 // pred_fallthru
          _
      $region68: #{tpu_custom_call.1} parent=5 // pred_fallthru
        _
    $region6: #{tpu_custom_call.1} parent=1 // loop_footer
      %s27 = sadd.s32 1, %s23
    $region7: #{tpu_custom_call.1} parent=1 // loop_footer_branch
      %22 = sbr.rel target = $region3
    $region8: #{tpu_custom_call.1} parent=1 // loop_exit
      _
    %1439 = vsyncpa [#allocation4], 1
    %s1440 = scalar_lea.sflag [#allocation4], 1
    %1441 = vsyncpa %s1440, 1
    %1442 = vsyncpa [#allocation7], 1
    %s1443 = scalar_lea.sflag [#allocation7], 1
    %1444 = vsyncpa %s1443, 1
    %1445 = vsyncpa [#allocation10], 1
    %s1446 = scalar_lea.sflag [#allocation10], 1
    %1447 = vsyncpa %s1446, 1
    %1448 = vsyncpa [#allocation5], 1
    %s1449 = scalar_lea.sflag [#allocation5], 1
    %1450 = vsyncpa %s1449, 1

</llo_original>
